<compile_context>
chip_gen: v5e
topology: v5e:2x2
jax: 0.10.0
libtpu: 0.0.40
codegen_flags: <defaults>
</compile_context>

<pallas_src>
import functools
import math

import jax
import jax.numpy as jnp
import numpy as np
from jax.experimental import pallas as pl
from jax.experimental.pallas import tpu as pltpu


def _round_up(x, m):
    return (x + m - 1) // m * m


# ---------------------------------------------------------------------------
# Pallas kernels
# ---------------------------------------------------------------------------
def _conv_bn_relu_kernel(x_ref, w_ref, shift_ref, o_ref, acc_ref, *, wp2):
    """One depth tap (kd grid axis) of conv1, fused with BN shift + ReLU.

    x_ref:     (Cq, R)         bf16  parity-split input slab for depth (do + a)
    w_ref:     (16, C_out, Cq) bf16  per-(kh,kw)-tap weights (BN scale folded in)
    shift_ref: (C_out, 1)      f32   BN shift
    o_ref:     (C_out, Rs)     bf16  conv output (spatial positions on lanes)
    acc_ref:   (C_out, Rs)     f32   accumulator across the kd grid axis
    """
    a = pl.program_id(2)

    @pl.when(a == 0)
    def _init():
        acc_ref[...] = jnp.zeros_like(acc_ref)

    rs = acc_ref.shape[1]
    xv = x_ref[...]          # (Cq, R)   bf16
    wv = w_ref[...]          # (16, C_out, Cq) bf16

    part = None
    for bq in range(4):           # kh parity-group taps
        for cq in range(4):       # kw parity-group taps
            off = bq * wp2 + cq   # static lane offset into the flattened plane
            slab = xv[:, off:off + rs]                           # (Cq, Rs)
            d = jnp.dot(wv[bq * 4 + cq], slab,
                        preferred_element_type=jnp.float32)      # (C_out, Rs) f32
            part = d if part is None else part + d
    acc_ref[...] += part

    @pl.when(a == pl.num_programs(2) - 1)
    def _finalize():
        y = acc_ref[...] + shift_ref[...]          # BN shift (scale already folded)
        o_ref[...] = jnp.maximum(y, 0.0).astype(o_ref.dtype)


def conv_bn_relu(x2, w_taps, shift, *, d_out, rs, wp2):
    """x2: (N, Dp, Cq, R) bf16;  w_taps: (5, 16, C_out, Cq) bf16;  shift: (C_out, 1) f32."""
    n, _, cq, r = x2.shape
    kd, t, c_out, _ = w_taps.shape
    kernel = functools.partial(_conv_bn_relu_kernel, wp2=wp2)
    return pl.pallas_call(
        kernel,
        out_shape=jax.ShapeDtypeStruct((n, d_out, c_out, rs), jnp.bfloat16),
        grid=(n, d_out, kd),
        in_specs=[
            # depth-tap slab of the raw (parity-split) input: no im2col in HBM
            pl.BlockSpec((None, None, cq, r), lambda i, j, a: (i, j + a, 0, 0)),
            pl.BlockSpec((None, t, c_out, cq), lambda i, j, a: (a, 0, 0, 0)),
            pl.BlockSpec((c_out, 1), lambda i, j, a: (0, 0)),
        ],
        out_specs=pl.BlockSpec((None, None, c_out, rs), lambda i, j, a: (i, j, 0, 0)),
        scratch_shapes=[pltpu.VMEM((c_out, rs), jnp.float32)],
        compiler_params=pltpu.CompilerParams(
            dimension_semantics=("parallel", "parallel", "arbitrary"),
            vmem_limit_bytes=64 * 1024 * 1024,
        ),
    )(x2, w_taps, shift)


def _maxpool_kernel(y_ref, o_ref):
    """3x3 / stride-2 max pool as 9 unit-shifted slices of 4 parity planes (VPU max tree)."""
    y = y_ref[...].astype(jnp.float32)      # (4, C, Hq, Wq); f32 math (v5e has no bf16 VPU)
    c, hp, wp = o_ref.shape
    taps = ((0, 0), (1, 0), (0, 1))         # (parity, unit shift) per spatial axis
    m = None
    for br, dh in taps:
        for cr, dw in taps:
            t = y[br * 2 + cr, :, dh:dh + hp, dw:dw + wp]
            m = t if m is None else jnp.maximum(m, t)
    o_ref[...] = m


def maxpool_3x3_s2(yq):
    """yq: (N, Do, 4, C, Hq, Wq) bf16 parity-split, zero-padded (post-ReLU) conv output."""
    n, d_out, p4, c, hq, wq = yq.shape
    hp, wp = hq - 1, wq - 1
    return pl.pallas_call(
        _maxpool_kernel,
        out_shape=jax.ShapeDtypeStruct((n, d_out, c, hp, wp), jnp.float32),
        grid=(n, d_out),
        in_specs=[pl.BlockSpec((None, None, p4, c, hq, wq),
                               lambda i, j: (i, j, 0, 0, 0, 0))],
        out_specs=pl.BlockSpec((None, None, c, hp, wp),
                               lambda i, j: (i, j, 0, 0, 0)),
        compiler_params=pltpu.CompilerParams(
            dimension_semantics=("parallel", "parallel"),
            vmem_limit_bytes=64 * 1024 * 1024,
        ),
    )(yq)


# ---------------------------------------------------------------------------
# Module wrapper (stem of the PyTorch ResNet18)
# ---------------------------------------------------------------------------
class ResNet18StemPallas:
    """conv1 -> bn1 -> relu -> maxpool of the PyTorch ResNet18 module (eval-mode BN)."""

    def __init__(self, key, *, in_channels, low_rate, alpha, t2s_mul, base_channel):
        self.in_channels = in_channels
        self.low_rate = low_rate
        self.alpha = alpha
        self.t2s_mul = t2s_mul
        self.base_channel = base_channel
        self.c_out = base_channel // (1 if low_rate else alpha)

        # Conv3d(in, c_out, k=(5,7,7), stride=(1,2,2), pad=(2,3,3), bias=False)
        # init_params(): normal(0, sqrt(2/n)), n = kd*kh*kw*out_channels
        n = 5 * 7 * 7 * self.c_out
        self.conv1_w = jax.random.normal(
            key, (self.c_out, in_channels, 5, 7, 7), jnp.float32
        ) * math.sqrt(2.0 / n)

        # BatchNorm3d (eval semantics): gamma=1, beta=0, running stats 0/1
        self.bn1_gamma = jnp.ones((self.c_out,), jnp.float32)
        self.bn1_beta = jnp.zeros((self.c_out,), jnp.float32)
        self.bn1_mean = jnp.zeros((self.c_out,), jnp.float32)
        self.bn1_var = jnp.ones((self.c_out,), jnp.float32)
        self.eps = 1e-5

        # One-time constant folds: BN scale folded into the conv weights, weights
        # rearranged into parity-tap layout (a, t=(bq,cq), co, q=(br,cr,ci)), bf16.
        scale = self.bn1_gamma / jnp.sqrt(self.bn1_var + self.eps)
        self.bn_shift = (self.bn1_beta - self.bn1_mean * scale).reshape(self.c_out, 1)
        cin, cout = in_channels, self.c_out
        w = jnp.pad(self.conv1_w, ((0, 0), (0, 0), (0, 0), (0, 1), (0, 1)))  # kh,kw -> 8
        w = w.reshape(cout, cin, 5, 4, 2, 4, 2)                  # (co, ci, a, bq, br, cq, cr)
        w = jnp.transpose(w, (2, 3, 5, 0, 4, 6, 1))              # (a, bq, cq, co, br, cr, ci)
        w = w.reshape(5, 16, cout, 4 * cin)                      # taps t = bq*4+cq
        w = w * scale.reshape(1, 1, cout, 1)
        self.w_taps = w.astype(jnp.bfloat16)

    def __call__(self, x_ncdhw):
        n, cin, d, h, w = x_ncdhw.shape
        assert cin == self.in_channels
        assert h % 4 == 0 and w % 4 == 0, "stem parity layout needs H, W divisible by 4"

        cq = 4 * cin
        dp, hp2, wp2 = d + 4, (h + 6) // 2, (w + 6) // 2
        d_out, ho, wo = d, h // 2, w // 2          # conv1 output extents
        hp, wp = ho // 2, wo // 2                  # maxpool output extents
        rs = _round_up(ho * wp2, 128)              # lane-dense conv output row length
        r = _round_up(max(hp2 * wp2, 3 * wp2 + 3 + rs), 128)

        # ---- single O(x) prep pass: pad + parity space-to-depth + bf16 (no im2col) ----
        xp = jnp.pad(x_ncdhw, ((0, 0), (0, 0), (2, 2), (3, 3), (3, 3)))
        xs = xp.reshape(n, cin, dp, hp2, 2, wp2, 2)
        xs = jnp.transpose(xs, (0, 2, 4, 6, 1, 3, 5))      # (n, d, br, cr, ci, hq, wq)
        x2 = xs.reshape(n, dp, cq, hp2 * wp2)
        x2 = jnp.pad(x2, ((0, 0), (0, 0), (0, 0), (0, r - hp2 * wp2)))
        x2 = x2.astype(jnp.bfloat16)

        # ---- conv1 + bn1 + relu (Pallas, f32 accumulation across the kd grid axis) ----
        y = conv_bn_relu(x2, self.w_taps, self.bn_shift, d_out=d_out, rs=rs, wp2=wp2)

        # ---- maxpool k=(1,3,3) s=(1,2,2) p=(0,1,1) (Pallas) ----
        # strip junk columns / lane padding, then parity-split once (reads y once).
        y = y[..., :ho * wp2].reshape(n, d_out, self.c_out, ho, wp2)[..., :wo]
        # zero-padding is safe: post-ReLU values are >= 0 and every window has a valid tap
        yp = jnp.pad(y, ((0, 0), (0, 0), (0, 0), (1, 1), (1, 1)))
        hq, wq = hp + 1, wp + 1
        yq = yp.reshape(n, d_out, self.c_out, hq, 2, wq, 2)
        yq = jnp.transpose(yq, (0, 1, 4, 6, 2, 3, 5)).reshape(
            n, d_out, 4, self.c_out, hq, wq)
        pooled = maxpool_3x3_s2(yq)                # (N, Do, C, Hp, Wp) f32

        # back to NCDHW (PyTorch convention)
        return jnp.transpose(pooled, (0, 2, 1, 3, 4))


# ---------------------------------------------------------------------------
# main
# ---------------------------------------------------------------------------
if __name__ == "__main__":
    key = jax.random.PRNGKey(0)
    kp, kx = jax.random.split(key)

    # small, forward-consistent shapes: video-style NCDHW input
    model = ResNet18StemPallas(
        kp, in_channels=3, low_rate=1, alpha=4, t2s_mul=1, base_channel=16
    )
    x = jax.random.normal(kx, (2, 3, 8, 16, 16), jnp.float32)  # NCDHW

    fwd = jax.jit(lambda inp: model(inp))
    out = jax.block_until_ready(fwd(x))
    assert out.shape == (2, 16, 8, 4, 4), out.shape

    # reference check against XLA conv / reduce_window (same stem semantics, f32)
    ref = jax.lax.conv_general_dilated(
        x, model.conv1_w, window_strides=(1, 2, 2),
        padding=((2, 2), (3, 3), (3, 3)),
        dimension_numbers=("NCDHW", "OIDHW", "NCDHW"),
        precision=jax.lax.Precision.HIGHEST,
    )
    scale_vec = model.bn1_gamma / jnp.sqrt(model.bn1_var + model.eps)
    shift_vec = model.bn1_beta - model.bn1_mean * scale_vec
    ref = ref * scale_vec[None, :, None, None, None] + shift_vec[None, :, None, None, None]
    ref = jnp.maximum(ref, 0.0)
    ref = jax.lax.reduce_window(
        ref, -jnp.inf, jax.lax.max,
        window_dimensions=(1, 1, 1, 3, 3),
        window_strides=(1, 1, 1, 2, 2),
        padding=((0, 0), (0, 0), (0, 0), (1, 1), (1, 1)),
    )
    np.testing.assert_allclose(np.asarray(out), np.asarray(ref),
                               rtol=2e-2, atol=2e-2)

    print("KERNEL_OK")
</pallas_src>

<mosaic_0001>
module attributes {stable_mosaic.version = 11 : i64} {
  func.func @_conv_bn_relu_kernel(%arg0: i32, %arg1: i32, %arg2: i32, %arg3: memref<1x1x12x256xbf16, #tpu.memory_space<vmem>>, %arg4: memref<1x16x16x12xbf16, #tpu.memory_space<vmem>>, %arg5: memref<16x1xf32, #tpu.memory_space<vmem>>, %arg6: memref<1x1x16x128xbf16, #tpu.memory_space<vmem>>, %arg7: memref<16x128xf32, #tpu.memory_space<vmem>>) attributes {dimension_semantics = [#tpu.dimension_semantics<parallel>, #tpu.dimension_semantics<parallel>, #tpu.dimension_semantics<arbitrary>], iteration_bounds = array<i64: 2, 8, 5>, scalar_prefetch = 0 : i64, scratch_operands = 1 : i64, tpu.core_type = #tpu.core_type<tc>, window_params = [{transform_indices = @transform_0, window_bounds = array<i64: 1, 1, 12, 256>}, {transform_indices = @transform_1, window_bounds = array<i64: 1, 16, 16, 12>}, {pipeline_mode = #tpu.pipeline_mode<synchronous>, transform_indices = @transform_2, window_bounds = array<i64: 16, 1>}, {transform_indices = @transform_3, window_bounds = array<i64: 1, 1, 16, 128>}]} {
    %c0_i32 = arith.constant 0 : i32
    %0 = arith.cmpi eq, %arg2, %c0_i32 : i32
    %1 = arith.extui %0 : i1 to i32
    %c0_i32_0 = arith.constant 0 : i32
    %2 = arith.cmpi ne, %1, %c0_i32_0 : i32
    scf.if %2 {
      %cst_28 = arith.constant 0.000000e+00 : f32
      %92 = vector.broadcast %cst_28 : f32 to vector<16x128xf32>
      %c0_29 = arith.constant 0 : index
      %c0_30 = arith.constant 0 : index
      %93 = vector.load %arg7[%c0_29, %c0_30] : memref<16x128xf32, #tpu.memory_space<vmem>>, vector<16x128xf32>
      tpu.vector_store %arg7[%c0_29, %c0_30], %92 {strides = array<i32>} : memref<16x128xf32, #tpu.memory_space<vmem>>, vector<16x128xf32>,
    } else {
    }
    %c0 = arith.constant 0 : index
    %c0_1 = arith.constant 0 : index
    %c0_2 = arith.constant 0 : index
    %c0_3 = arith.constant 0 : index
    %3 = vector.load %arg3[%c0, %c0_1, %c0_2, %c0_3] : memref<1x1x12x256xbf16, #tpu.memory_space<vmem>>, vector<1x1x12x256xbf16>
    %4 = vector.shape_cast %3 : vector<1x1x12x256xbf16> to vector<12x256xbf16>
    %c0_4 = arith.constant 0 : index
    %c0_5 = arith.constant 0 : index
    %c0_6 = arith.constant 0 : index
    %c0_7 = arith.constant 0 : index
    %5 = vector.load %arg4[%c0_4, %c0_5, %c0_6, %c0_7] : memref<1x16x16x12xbf16, #tpu.memory_space<vmem>>, vector<1x16x16x12xbf16>
    %6 = vector.shape_cast %5 : vector<1x16x16x12xbf16> to vector<16x16x12xbf16>
    %7 = vector.extract_strided_slice %4 {offsets = [0, 0], sizes = [12, 128], strides = [1, 1]} : vector<12x256xbf16> to vector<12x128xbf16>
    %8 = vector.extract_strided_slice %6 {offsets = [0, 0, 0], sizes = [1, 16, 12], strides = [1, 1, 1]} : vector<16x16x12xbf16> to vector<1x16x12xbf16>
    %9 = vector.shape_cast %8 : vector<1x16x12xbf16> to vector<16x12xbf16>
    %cst = arith.constant dense<0.000000e+00> : vector<16x128xf32>
    %10 = tpu.matmul %9, %7, %cst {dimension_numbers = #tpu.dot_dimension_numbers<[1], [0], [0], [1], [0, 0, 1, 1], [], []>} : vector<16x12xbf16>, vector<12x128xbf16>, vector<16x128xf32> -> vector<16x128xf32>
    %11 = vector.extract_strided_slice %4 {offsets = [0, 1], sizes = [12, 128], strides = [1, 1]} : vector<12x256xbf16> to vector<12x128xbf16>
    %12 = vector.extract_strided_slice %6 {offsets = [1, 0, 0], sizes = [1, 16, 12], strides = [1, 1, 1]} : vector<16x16x12xbf16> to vector<1x16x12xbf16>
    %13 = vector.shape_cast %12 : vector<1x16x12xbf16> to vector<16x12xbf16>
    %cst_8 = arith.constant dense<0.000000e+00> : vector<16x128xf32>
    %14 = tpu.matmul %13, %11, %cst_8 {dimension_numbers = #tpu.dot_dimension_numbers<[1], [0], [0], [1], [0, 0, 1, 1], [], []>} : vector<16x12xbf16>, vector<12x128xbf16>, vector<16x128xf32> -> vector<16x128xf32>
    %15 = arith.addf %10, %14 : vector<16x128xf32>
    %16 = vector.extract_strided_slice %4 {offsets = [0, 2], sizes = [12, 128], strides = [1, 1]} : vector<12x256xbf16> to vector<12x128xbf16>
    %17 = vector.extract_strided_slice %6 {offsets = [2, 0, 0], sizes = [1, 16, 12], strides = [1, 1, 1]} : vector<16x16x12xbf16> to vector<1x16x12xbf16>
    %18 = vector.shape_cast %17 : vector<1x16x12xbf16> to vector<16x12xbf16>
    %cst_9 = arith.constant dense<0.000000e+00> : vector<16x128xf32>
    %19 = tpu.matmul %18, %16, %cst_9 {dimension_numbers = #tpu.dot_dimension_numbers<[1], [0], [0], [1], [0, 0, 1, 1], [], []>} : vector<16x12xbf16>, vector<12x128xbf16>, vector<16x128xf32> -> vector<16x128xf32>
    %20 = arith.addf %15, %19 : vector<16x128xf32>
    %21 = vector.extract_strided_slice %4 {offsets = [0, 3], sizes = [12, 128], strides = [1, 1]} : vector<12x256xbf16> to vector<12x128xbf16>
    %22 = vector.extract_strided_slice %6 {offsets = [3, 0, 0], sizes = [1, 16, 12], strides = [1, 1, 1]} : vector<16x16x12xbf16> to vector<1x16x12xbf16>
    %23 = vector.shape_cast %22 : vector<1x16x12xbf16> to vector<16x12xbf16>
    %cst_10 = arith.constant dense<0.000000e+00> : vector<16x128xf32>
    %24 = tpu.matmul %23, %21, %cst_10 {dimension_numbers = #tpu.dot_dimension_numbers<[1], [0], [0], [1], [0, 0, 1, 1], [], []>} : vector<16x12xbf16>, vector<12x128xbf16>, vector<16x128xf32> -> vector<16x128xf32>
    %25 = arith.addf %20, %24 : vector<16x128xf32>
    %26 = vector.extract_strided_slice %4 {offsets = [0, 11], sizes = [12, 128], strides = [1, 1]} : vector<12x256xbf16> to vector<12x128xbf16>
    %27 = vector.extract_strided_slice %6 {offsets = [4, 0, 0], sizes = [1, 16, 12], strides = [1, 1, 1]} : vector<16x16x12xbf16> to vector<1x16x12xbf16>
    %28 = vector.shape_cast %27 : vector<1x16x12xbf16> to vector<16x12xbf16>
    %cst_11 = arith.constant dense<0.000000e+00> : vector<16x128xf32>
    %29 = tpu.matmul %28, %26, %cst_11 {dimension_numbers = #tpu.dot_dimension_numbers<[1], [0], [0], [1], [0, 0, 1, 1], [], []>} : vector<16x12xbf16>, vector<12x128xbf16>, vector<16x128xf32> -> vector<16x128xf32>
    %30 = arith.addf %25, %29 : vector<16x128xf32>
    %31 = vector.extract_strided_slice %4 {offsets = [0, 12], sizes = [12, 128], strides = [1, 1]} : vector<12x256xbf16> to vector<12x128xbf16>
    %32 = vector.extract_strided_slice %6 {offsets = [5, 0, 0], sizes = [1, 16, 12], strides = [1, 1, 1]} : vector<16x16x12xbf16> to vector<1x16x12xbf16>
    %33 = vector.shape_cast %32 : vector<1x16x12xbf16> to vector<16x12xbf16>
    %cst_12 = arith.constant dense<0.000000e+00> : vector<16x128xf32>
    %34 = tpu.matmul %33, %31, %cst_12 {dimension_numbers = #tpu.dot_dimension_numbers<[1], [0], [0], [1], [0, 0, 1, 1], [], []>} : vector<16x12xbf16>, vector<12x128xbf16>, vector<16x128xf32> -> vector<16x128xf32>
    %35 = arith.addf %30, %34 : vector<16x128xf32>
    %36 = vector.extract_strided_slice %4 {offsets = [0, 13], sizes = [12, 128], strides = [1, 1]} : vector<12x256xbf16> to vector<12x128xbf16>
    %37 = vector.extract_strided_slice %6 {offsets = [6, 0, 0], sizes = [1, 16, 12], strides = [1, 1, 1]} : vector<16x16x12xbf16> to vector<1x16x12xbf16>
    %38 = vector.shape_cast %37 : vector<1x16x12xbf16> to vector<16x12xbf16>
    %cst_13 = arith.constant dense<0.000000e+00> : vector<16x128xf32>
    %39 = tpu.matmul %38, %36, %cst_13 {dimension_numbers = #tpu.dot_dimension_numbers<[1], [0], [0], [1], [0, 0, 1, 1], [], []>} : vector<16x12xbf16>, vector<12x128xbf16>, vector<16x128xf32> -> vector<16x128xf32>
    %40 = arith.addf %35, %39 : vector<16x128xf32>
    %41 = vector.extract_strided_slice %4 {offsets = [0, 14], sizes = [12, 128], strides = [1, 1]} : vector<12x256xbf16> to vector<12x128xbf16>
    %42 = vector.extract_strided_slice %6 {offsets = [7, 0, 0], sizes = [1, 16, 12], strides = [1, 1, 1]} : vector<16x16x12xbf16> to vector<1x16x12xbf16>
    %43 = vector.shape_cast %42 : vector<1x16x12xbf16> to vector<16x12xbf16>
    %cst_14 = arith.constant dense<0.000000e+00> : vector<16x128xf32>
    %44 = tpu.matmul %43, %41, %cst_14 {dimension_numbers = #tpu.dot_dimension_numbers<[1], [0], [0], [1], [0, 0, 1, 1], [], []>} : vector<16x12xbf16>, vector<12x128xbf16>, vector<16x128xf32> -> vector<16x128xf32>
    %45 = arith.addf %40, %44 : vector<16x128xf32>
    %46 = vector.extract_strided_slice %4 {offsets = [0, 22], sizes = [12, 128], strides = [1, 1]} : vector<12x256xbf16> to vector<12x128xbf16>
    %47 = vector.extract_strided_slice %6 {offsets = [8, 0, 0], sizes = [1, 16, 12], strides = [1, 1, 1]} : vector<16x16x12xbf16> to vector<1x16x12xbf16>
    %48 = vector.shape_cast %47 : vector<1x16x12xbf16> to vector<16x12xbf16>
    %cst_15 = arith.constant dense<0.000000e+00> : vector<16x128xf32>
    %49 = tpu.matmul %48, %46, %cst_15 {dimension_numbers = #tpu.dot_dimension_numbers<[1], [0], [0], [1], [0, 0, 1, 1], [], []>} : vector<16x12xbf16>, vector<12x128xbf16>, vector<16x128xf32> -> vector<16x128xf32>
    %50 = arith.addf %45, %49 : vector<16x128xf32>
    %51 = vector.extract_strided_slice %4 {offsets = [0, 23], sizes = [12, 128], strides = [1, 1]} : vector<12x256xbf16> to vector<12x128xbf16>
    %52 = vector.extract_strided_slice %6 {offsets = [9, 0, 0], sizes = [1, 16, 12], strides = [1, 1, 1]} : vector<16x16x12xbf16> to vector<1x16x12xbf16>
    %53 = vector.shape_cast %52 : vector<1x16x12xbf16> to vector<16x12xbf16>
    %cst_16 = arith.constant dense<0.000000e+00> : vector<16x128xf32>
    %54 = tpu.matmul %53, %51, %cst_16 {dimension_numbers = #tpu.dot_dimension_numbers<[1], [0], [0], [1], [0, 0, 1, 1], [], []>} : vector<16x12xbf16>, vector<12x128xbf16>, vector<16x128xf32> -> vector<16x128xf32>
    %55 = arith.addf %50, %54 : vector<16x128xf32>
    %56 = vector.extract_strided_slice %4 {offsets = [0, 24], sizes = [12, 128], strides = [1, 1]} : vector<12x256xbf16> to vector<12x128xbf16>
    %57 = vector.extract_strided_slice %6 {offsets = [10, 0, 0], sizes = [1, 16, 12], strides = [1, 1, 1]} : vector<16x16x12xbf16> to vector<1x16x12xbf16>
    %58 = vector.shape_cast %57 : vector<1x16x12xbf16> to vector<16x12xbf16>
    %cst_17 = arith.constant dense<0.000000e+00> : vector<16x128xf32>
    %59 = tpu.matmul %58, %56, %cst_17 {dimension_numbers = #tpu.dot_dimension_numbers<[1], [0], [0], [1], [0, 0, 1, 1], [], []>} : vector<16x12xbf16>, vector<12x128xbf16>, vector<16x128xf32> -> vector<16x128xf32>
    %60 = arith.addf %55, %59 : vector<16x128xf32>
    %61 = vector.extract_strided_slice %4 {offsets = [0, 25], sizes = [12, 128], strides = [1, 1]} : vector<12x256xbf16> to vector<12x128xbf16>
    %62 = vector.extract_strided_slice %6 {offsets = [11, 0, 0], sizes = [1, 16, 12], strides = [1, 1, 1]} : vector<16x16x12xbf16> to vector<1x16x12xbf16>
    %63 = vector.shape_cast %62 : vector<1x16x12xbf16> to vector<16x12xbf16>
    %cst_18 = arith.constant dense<0.000000e+00> : vector<16x128xf32>
    %64 = tpu.matmul %63, %61, %cst_18 {dimension_numbers = #tpu.dot_dimension_numbers<[1], [0], [0], [1], [0, 0, 1, 1], [], []>} : vector<16x12xbf16>, vector<12x128xbf16>, vector<16x128xf32> -> vector<16x128xf32>
    %65 = arith.addf %60, %64 : vector<16x128xf32>
    %66 = vector.extract_strided_slice %4 {offsets = [0, 33], sizes = [12, 128], strides = [1, 1]} : vector<12x256xbf16> to vector<12x128xbf16>
    %67 = vector.extract_strided_slice %6 {offsets = [12, 0, 0], sizes = [1, 16, 12], strides = [1, 1, 1]} : vector<16x16x12xbf16> to vector<1x16x12xbf16>
    %68 = vector.shape_cast %67 : vector<1x16x12xbf16> to vector<16x12xbf16>
    %cst_19 = arith.constant dense<0.000000e+00> : vector<16x128xf32>
    %69 = tpu.matmul %68, %66, %cst_19 {dimension_numbers = #tpu.dot_dimension_numbers<[1], [0], [0], [1], [0, 0, 1, 1], [], []>} : vector<16x12xbf16>, vector<12x128xbf16>, vector<16x128xf32> -> vector<16x128xf32>
    %70 = arith.addf %65, %69 : vector<16x128xf32>
    %71 = vector.extract_strided_slice %4 {offsets = [0, 34], sizes = [12, 128], strides = [1, 1]} : vector<12x256xbf16> to vector<12x128xbf16>
    %72 = vector.extract_strided_slice %6 {offsets = [13, 0, 0], sizes = [1, 16, 12], strides = [1, 1, 1]} : vector<16x16x12xbf16> to vector<1x16x12xbf16>
    %73 = vector.shape_cast %72 : vector<1x16x12xbf16> to vector<16x12xbf16>
    %cst_20 = arith.constant dense<0.000000e+00> : vector<16x128xf32>
    %74 = tpu.matmul %73, %71, %cst_20 {dimension_numbers = #tpu.dot_dimension_numbers<[1], [0], [0], [1], [0, 0, 1, 1], [], []>} : vector<16x12xbf16>, vector<12x128xbf16>, vector<16x128xf32> -> vector<16x128xf32>
    %75 = arith.addf %70, %74 : vector<16x128xf32>
    %76 = vector.extract_strided_slice %4 {offsets = [0, 35], sizes = [12, 128], strides = [1, 1]} : vector<12x256xbf16> to vector<12x128xbf16>
    %77 = vector.extract_strided_slice %6 {offsets = [14, 0, 0], sizes = [1, 16, 12], strides = [1, 1, 1]} : vector<16x16x12xbf16> to vector<1x16x12xbf16>
    %78 = vector.shape_cast %77 : vector<1x16x12xbf16> to vector<16x12xbf16>
    %cst_21 = arith.constant dense<0.000000e+00> : vector<16x128xf32>
    %79 = tpu.matmul %78, %76, %cst_21 {dimension_numbers = #tpu.dot_dimension_numbers<[1], [0], [0], [1], [0, 0, 1, 1], [], []>} : vector<16x12xbf16>, vector<12x128xbf16>, vector<16x128xf32> -> vector<16x128xf32>
    %80 = arith.addf %75, %79 : vector<16x128xf32>
    %81 = vector.extract_strided_slice %4 {offsets = [0, 36], sizes = [12, 128], strides = [1, 1]} : vector<12x256xbf16> to vector<12x128xbf16>
    %82 = vector.extract_strided_slice %6 {offsets = [15, 0, 0], sizes = [1, 16, 12], strides = [1, 1, 1]} : vector<16x16x12xbf16> to vector<1x16x12xbf16>
    %83 = vector.shape_cast %82 : vector<1x16x12xbf16> to vector<16x12xbf16>
    %cst_22 = arith.constant dense<0.000000e+00> : vector<16x128xf32>
    %84 = tpu.matmul %83, %81, %cst_22 {dimension_numbers = #tpu.dot_dimension_numbers<[1], [0], [0], [1], [0, 0, 1, 1], [], []>} : vector<16x12xbf16>, vector<12x128xbf16>, vector<16x128xf32> -> vector<16x128xf32>
    %85 = arith.addf %80, %84 : vector<16x128xf32>
    %c0_23 = arith.constant 0 : index
    %c0_24 = arith.constant 0 : index
    %86 = vector.load %arg7[%c0_23, %c0_24] : memref<16x128xf32, #tpu.memory_space<vmem>>, vector<16x128xf32>
    %87 = arith.addf %86, %85 : vector<16x128xf32>
    %c0_25 = arith.constant 0 : index
    %c0_26 = arith.constant 0 : index
    %88 = vector.load %arg7[%c0_25, %c0_26] : memref<16x128xf32, #tpu.memory_space<vmem>>, vector<16x128xf32>
    tpu.vector_store %arg7[%c0_25, %c0_26], %87 {strides = array<i32>} : memref<16x128xf32, #tpu.memory_space<vmem>>, vector<16x128xf32>,
    %c4_i32 = arith.constant 4 : i32
    %89 = arith.cmpi eq, %arg2, %c4_i32 : i32
    %90 = arith.extui %89 : i1 to i32
    %c0_i32_27 = arith.constant 0 : i32
    %91 = arith.cmpi ne, %90, %c0_i32_27 : i32
    scf.if %91 {
      %c0_28 = arith.constant 0 : index
      %c0_29 = arith.constant 0 : index
      %92 = vector.load %arg7[%c0_28, %c0_29] : memref<16x128xf32, #tpu.memory_space<vmem>>, vector<16x128xf32>
      %c0_30 = arith.constant 0 : index
      %c0_31 = arith.constant 0 : index
      %93 = vector.load %arg5[%c0_30, %c0_31] : memref<16x1xf32, #tpu.memory_space<vmem>>, vector<16x1xf32>
      %94 = vector.broadcast %93 : vector<16x1xf32> to vector<16x128xf32>
      %95 = arith.addf %92, %94 : vector<16x128xf32>
      %cst_32 = arith.constant 0.000000e+00 : f32
      %96 = vector.broadcast %cst_32 : f32 to vector<16x128xf32>
      %97 = arith.maximumf %95, %96 : vector<16x128xf32>
      %98 = arith.truncf %97 : vector<16x128xf32> to vector<16x128xbf16>
      %c0_33 = arith.constant 0 : index
      %c0_34 = arith.constant 0 : index
      %c0_35 = arith.constant 0 : index
      %c0_36 = arith.constant 0 : index
      %99 = vector.load %arg6[%c0_33, %c0_34, %c0_35, %c0_36] : memref<1x1x16x128xbf16, #tpu.memory_space<vmem>>, vector<1x1x16x128xbf16>
      %100 = vector.shape_cast %99 : vector<1x1x16x128xbf16> to vector<16x128xbf16>
      %101 = vector.shape_cast %98 : vector<16x128xbf16> to vector<1x1x16x128xbf16>
      tpu.vector_store %arg6[%c0_33, %c0_34, %c0_35, %c0_36], %101 {strides = array<i32>} : memref<1x1x16x128xbf16, #tpu.memory_space<vmem>>, vector<1x1x16x128xbf16>,
    } else {
    }
    return
  }
  func.func @transform_0(%arg0: i32, %arg1: i32, %arg2: i32) -> (i32, i32, i32, i32) {
    %0 = arith.addi %arg1, %arg2 : i32
    %c0_i32 = arith.constant 0 : i32
    %c0_i32_0 = arith.constant 0 : i32
    %c0_i32_1 = arith.constant 0 : i32
    return %arg0, %0, %c0_i32, %c0_i32_0 : i32, i32, i32, i32
  }
  func.func @transform_1(%arg0: i32, %arg1: i32, %arg2: i32) -> (i32, i32, i32, i32) {
    %c0_i32 = arith.constant 0 : i32
    %c0_i32_0 = arith.constant 0 : i32
    %c0_i32_1 = arith.constant 0 : i32
    %c0_i32_2 = arith.constant 0 : i32
    return %arg2, %c0_i32, %c0_i32_0, %c0_i32_1 : i32, i32, i32, i32
  }
  func.func @transform_2(%arg0: i32, %arg1: i32, %arg2: i32) -> (i32, i32) {
    %c0_i32 = arith.constant 0 : i32
    %c0_i32_0 = arith.constant 0 : i32
    %c0_i32_1 = arith.constant 0 : i32
    return %c0_i32, %c0_i32_0 : i32, i32
  }
  func.func @transform_3(%arg0: i32, %arg1: i32, %arg2: i32) -> (i32, i32, i32, i32) {
    %c0_i32 = arith.constant 0 : i32
    %c0_i32_0 = arith.constant 0 : i32
    %c0_i32_1 = arith.constant 0 : i32
    return %arg0, %arg1, %c0_i32, %c0_i32_0 : i32, i32, i32, i32
  }
}

module attributes {stable_mosaic.version = 11 : i64} {
  func.func @_maxpool_kernel(%arg0: i32, %arg1: i32, %arg2: memref<1x1x4x16x5x5xbf16, #tpu.memory_space<vmem>>, %arg3: memref<1x1x16x4x4xf32, #tpu.memory_space<vmem>>) attributes {dimension_semantics = [#tpu.dimension_semantics<parallel>, #tpu.dimension_semantics<parallel>], iteration_bounds = array<i64: 2, 8>, scalar_prefetch = 0 : i64, scratch_operands = 0 : i64, tpu.core_type = #tpu.core_type<tc>, window_params = [{transform_indices = @transform_0, window_bounds = array<i64: 1, 1, 4, 16, 5, 5>}, {transform_indices = @transform_1, window_bounds = array<i64: 1, 1, 16, 4, 4>}]} {
    %c0 = arith.constant 0 : index
    %c0_0 = arith.constant 0 : index
    %c0_1 = arith.constant 0 : index
    %c0_2 = arith.constant 0 : index
    %c0_3 = arith.constant 0 : index
    %c0_4 = arith.constant 0 : index
    %0 = vector.load %arg2[%c0, %c0_0, %c0_1, %c0_2, %c0_3, %c0_4] : memref<1x1x4x16x5x5xbf16, #tpu.memory_space<vmem>>, vector<1x1x4x16x5x5xbf16>
    %1 = vector.shape_cast %0 : vector<1x1x4x16x5x5xbf16> to vector<4x16x5x5xbf16>
    %2 = arith.extf %1 : vector<4x16x5x5xbf16> to vector<4x16x5x5xf32>
    %3 = vector.extract_strided_slice %2 {offsets = [0, 0, 0, 0], sizes = [1, 16, 4, 4], strides = [1, 1, 1, 1]} : vector<4x16x5x5xf32> to vector<1x16x4x4xf32>
    %4 = vector.shape_cast %3 : vector<1x16x4x4xf32> to vector<16x4x4xf32>
    %5 = vector.extract_strided_slice %2 {offsets = [1, 0, 0, 0], sizes = [1, 16, 4, 4], strides = [1, 1, 1, 1]} : vector<4x16x5x5xf32> to vector<1x16x4x4xf32>
    %6 = vector.shape_cast %5 : vector<1x16x4x4xf32> to vector<16x4x4xf32>
    %7 = arith.maximumf %4, %6 : vector<16x4x4xf32>
    %8 = vector.extract_strided_slice %2 {offsets = [0, 0, 0, 1], sizes = [1, 16, 4, 4], strides = [1, 1, 1, 1]} : vector<4x16x5x5xf32> to vector<1x16x4x4xf32>
    %9 = vector.shape_cast %8 : vector<1x16x4x4xf32> to vector<16x4x4xf32>
    %10 = arith.maximumf %7, %9 : vector<16x4x4xf32>
    %11 = vector.extract_strided_slice %2 {offsets = [2, 0, 0, 0], sizes = [1, 16, 4, 4], strides = [1, 1, 1, 1]} : vector<4x16x5x5xf32> to vector<1x16x4x4xf32>
    %12 = vector.shape_cast %11 : vector<1x16x4x4xf32> to vector<16x4x4xf32>
    %13 = arith.maximumf %10, %12 : vector<16x4x4xf32>
    %14 = vector.extract_strided_slice %2 {offsets = [3, 0, 0, 0], sizes = [1, 16, 4, 4], strides = [1, 1, 1, 1]} : vector<4x16x5x5xf32> to vector<1x16x4x4xf32>
    %15 = vector.shape_cast %14 : vector<1x16x4x4xf32> to vector<16x4x4xf32>
    %16 = arith.maximumf %13, %15 : vector<16x4x4xf32>
    %17 = vector.extract_strided_slice %2 {offsets = [2, 0, 0, 1], sizes = [1, 16, 4, 4], strides = [1, 1, 1, 1]} : vector<4x16x5x5xf32> to vector<1x16x4x4xf32>
    %18 = vector.shape_cast %17 : vector<1x16x4x4xf32> to vector<16x4x4xf32>
    %19 = arith.maximumf %16, %18 : vector<16x4x4xf32>
    %20 = vector.extract_strided_slice %2 {offsets = [0, 0, 1, 0], sizes = [1, 16, 4, 4], strides = [1, 1, 1, 1]} : vector<4x16x5x5xf32> to vector<1x16x4x4xf32>
    %21 = vector.shape_cast %20 : vector<1x16x4x4xf32> to vector<16x4x4xf32>
    %22 = arith.maximumf %19, %21 : vector<16x4x4xf32>
    %23 = vector.extract_strided_slice %2 {offsets = [1, 0, 1, 0], sizes = [1, 16, 4, 4], strides = [1, 1, 1, 1]} : vector<4x16x5x5xf32> to vector<1x16x4x4xf32>
    %24 = vector.shape_cast %23 : vector<1x16x4x4xf32> to vector<16x4x4xf32>
    %25 = arith.maximumf %22, %24 : vector<16x4x4xf32>
    %26 = vector.extract_strided_slice %2 {offsets = [0, 0, 1, 1], sizes = [1, 16, 4, 4], strides = [1, 1, 1, 1]} : vector<4x16x5x5xf32> to vector<1x16x4x4xf32>
    %27 = vector.shape_cast %26 : vector<1x16x4x4xf32> to vector<16x4x4xf32>
    %28 = arith.maximumf %25, %27 : vector<16x4x4xf32>
    %c0_5 = arith.constant 0 : index
    %c0_6 = arith.constant 0 : index
    %c0_7 = arith.constant 0 : index
    %c0_8 = arith.constant 0 : index
    %c0_9 = arith.constant 0 : index
    %29 = vector.load %arg3[%c0_5, %c0_6, %c0_7, %c0_8, %c0_9] : memref<1x1x16x4x4xf32, #tpu.memory_space<vmem>>, vector<1x1x16x4x4xf32>
    %30 = vector.shape_cast %29 : vector<1x1x16x4x4xf32> to vector<16x4x4xf32>
    %31 = vector.shape_cast %28 : vector<16x4x4xf32> to vector<1x1x16x4x4xf32>
    tpu.vector_store %arg3[%c0_5, %c0_6, %c0_7, %c0_8, %c0_9], %31 {strides = array<i32>} : memref<1x1x16x4x4xf32, #tpu.memory_space<vmem>>, vector<1x1x16x4x4xf32>,
    return
  }
  func.func @transform_0(%arg0: i32, %arg1: i32) -> (i32, i32, i32, i32, i32, i32) {
    %c0_i32 = arith.constant 0 : i32
    %c0_i32_0 = arith.constant 0 : i32
    %c0_i32_1 = arith.constant 0 : i32
    %c0_i32_2 = arith.constant 0 : i32
    %c0_i32_3 = arith.constant 0 : i32
    return %arg0, %arg1, %c0_i32, %c0_i32_0, %c0_i32_1, %c0_i32_2 : i32, i32, i32, i32, i32, i32
  }
  func.func @transform_1(%arg0: i32, %arg1: i32) -> (i32, i32, i32, i32, i32) {
    %c0_i32 = arith.constant 0 : i32
    %c0_i32_0 = arith.constant 0 : i32
    %c0_i32_1 = arith.constant 0 : i32
    %c0_i32_2 = arith.constant 0 : i32
    return %arg0, %arg1, %c0_i32, %c0_i32_0, %c0_i32_1 : i32, i32, i32, i32, i32
  }
}

</mosaic_0001>

<llo_original>
// kernel: _lambda_.2
$region0: #{_lambda_.2}
  #allocation0 [shape = 'u32[]', space=smem, size = 0x4, offset = 0x4, fixed_abs, tag = 'smem constant byte address 0x4 - core index']
  #allocation1 [shape = 'u32[72,128]{1,0:T(1,128)}', space=vmem, size = 0x9000, scoped, tag = 'internal scratch']
  #allocation2 [shape = 'f32[16,128]{1,0:T(8,128)}', space=vmem, size = 0x2000, scoped, tag = 'scratch operand']
  %s0 = inlined_call_operand.vmem [shape: bf16[2,12,12,256], index: 0, kind: input, shape index: {}]
  %s1 = inlined_call_operand.vmem [shape: bf16[5,16,16,12], index: 1, kind: input, shape index: {}]
  %s2 = inlined_call_operand.vmem [shape: f32[16,1], index: 2, kind: input, shape index: {}]
  %s3 = inlined_call_operand.vmem [shape: bf16[2,8,16,128], index: 3, kind: output, shape index: {}]
  %s4 = sld [smem:[#allocation0]]
  $region53: #{_lambda_.2} parent=0
    _
  %s6 = ssub.s32 1, %s4
  %s7 = scalar_select 0, %s6, %s4
  loop: start=0, step=1, limit=82
  $region2: #{_lambda_.2} parent=0 // loop_pre_header
    _
  $region3: #{_lambda_.2} parent=0 // loop_header
    %s9 = sphi 0, %s13
    %p10 = scmp.ge.s32.totalorder %s9, 82
    %s16 = sphi 0, %s35
    %s17 = sphi 0, %s31
    %s18 = sphi 0, %s27
    %s19 = sphi 0, %s16
    %s20 = sphi 0, %s17
    %s21 = sphi 0, %s18
    %s22 = sphi 0, %s19
    %s23 = sphi 0, %s20
    %s24 = sphi 0, %s21
    %s42 = sphi 0, %s44
    %s45 = sphi 0, %s42
    %s46 = sphi 0, %s45
    %s62 = sphi 0, %s46
    %s68 = sphi 0, %s70
    %s71 = sphi 0, %s68
    %s72 = sphi 0, %s71
    %s88 = sphi 0, %s72
    %s92 = sphi 0, %s92
    %s94 = sphi 0, %s92
    %s95 = sphi 0, %s94
    %s109 = sphi 0, %s95
    %s117 = sphi 0, %s119
    %s120 = sphi 0, %s117
    %s121 = sphi 0, %s120
    %s137 = sphi 0, %s121
  $region4: #{_lambda_.2} parent=0 // loop_header_branch
    %12 = sbr.rel (%p10) target = $region8
  $region5: #{_lambda_.2} parent=0 // loop_body
    %s14 = ssub.s32 %s9, 1
    %s15 = ssub.s32 %s9, 2
    %s25 = sadd.s32 1, %s18
    %p26 = scmp.ge.s32.totalorder %s25, 5
    %s27 = scalar_select %p26, 0, %s25
    %s28 = sadd.s32 1, %s17
    %s29 = scalar_select %p26, %s28, %s17
    %p30 = scmp.ge.s32.totalorder %s29, 8
    %s31 = scalar_select %p30, 0, %s29
    %s32 = sadd.s32 1, %s16
    %s33 = scalar_select %p30, %s32, %s16
    %p34 = scmp.ge.s32.totalorder %s33, 2
    %s35 = scalar_select %p34, 0, %s33
    %s36 = sadd.s32 %s17, %s18
    %s37 = sadd.s32 %s31, %s27
    %s38 = ssub.s32 %s16, %s35
    %s39 = ssub.s32 %s36, %s37
    %s40 = sor.u32 %s38, %s39
    %p41 = scmp.eq.s32.totalorder %s40, 0
    %s43 = sadd.s32 %s42, 1
    %s44 = scalar_select %p41, %s42, %s43
    %p47 = pneg %p41
    %p48 = scmp.eq.s32.totalorder %s9, 79
    %p49 = por %p47, %p48
    %p50 = scmp.ne.s32.totalorder %s42, %s45
    %p51 = scmp.eq.s32.totalorder %s9, 0
    %p52 = por %p50, %p51
    %p53 = scmp.ne.s32.totalorder %s42, %s45
    %p54 = scmp.eq.s32.totalorder %s14, 79
    %p55 = por %p53, %p54
    %p56 = scmp.ne.s32.totalorder %s45, %s46
    %p57 = scmp.eq.s32.totalorder %s14, 0
    %p58 = por %p56, %p57
    %p59 = scmp.ne.s32.totalorder %s45, %s46
    %p60 = scmp.eq.s32.totalorder %s15, 79
    %p61 = por %p59, %p60
    %p63 = scmp.ne.s32.totalorder %s46, %s62
    %p64 = scmp.eq.s32.totalorder %s15, 0
    %p65 = por %p63, %p64
    %s66 = ssub.s32 %s18, %s27
    %p67 = scmp.eq.s32.totalorder %s66, 0
    %s69 = sadd.s32 %s68, 1
    %s70 = scalar_select %p67, %s68, %s69
    %p73 = pneg %p67
    %p74 = scmp.eq.s32.totalorder %s9, 79
    %p75 = por %p73, %p74
    %p76 = scmp.ne.s32.totalorder %s68, %s71
    %p77 = scmp.eq.s32.totalorder %s9, 0
    %p78 = por %p76, %p77
    %p79 = scmp.ne.s32.totalorder %s68, %s71
    %p80 = scmp.eq.s32.totalorder %s14, 79
    %p81 = por %p79, %p80
    %p82 = scmp.ne.s32.totalorder %s71, %s72
    %p83 = scmp.eq.s32.totalorder %s14, 0
    %p84 = por %p82, %p83
    %p85 = scmp.ne.s32.totalorder %s71, %s72
    %p86 = scmp.eq.s32.totalorder %s15, 79
    %p87 = por %p85, %p86
    %p89 = scmp.ne.s32.totalorder %s72, %s88
    %p90 = scmp.eq.s32.totalorder %s15, 0
    %p91 = por %p89, %p90
    %s93 = sadd.s32 %s92, 1
    %p96 = scmp.eq.s32.totalorder %s9, 79
    %p97 = scmp.ne.s32.totalorder %s92, %s94
    %p98 = scmp.eq.s32.totalorder %s9, 0
    %p99 = por %p97, %p98
    %p100 = scmp.ne.s32.totalorder %s92, %s94
    %p101 = scmp.eq.s32.totalorder %s14, 79
    %p102 = por %p100, %p101
    %p103 = scmp.ne.s32.totalorder %s94, %s95
    %p104 = scmp.eq.s32.totalorder %s14, 0
    %p105 = por %p103, %p104
    %p106 = scmp.ne.s32.totalorder %s94, %s95
    %p107 = scmp.eq.s32.totalorder %s15, 79
    %p108 = por %p106, %p107
    %p110 = scmp.ne.s32.totalorder %s95, %s109
    %p111 = scmp.eq.s32.totalorder %s15, 0
    %p112 = por %p110, %p111
    %s113 = ssub.s32 %s16, %s35
    %s114 = ssub.s32 %s17, %s31
    %s115 = sor.u32 %s113, %s114
    %p116 = scmp.eq.s32.totalorder %s115, 0
    %s118 = sadd.s32 %s117, 1
    %s119 = scalar_select %p116, %s117, %s118
    %p122 = pneg %p116
    %p123 = scmp.eq.s32.totalorder %s9, 79
    %p124 = por %p122, %p123
    %p125 = scmp.ne.s32.totalorder %s117, %s120
    %p126 = scmp.eq.s32.totalorder %s9, 0
    %p127 = por %p125, %p126
    %p128 = scmp.ne.s32.totalorder %s117, %s120
    %p129 = scmp.eq.s32.totalorder %s14, 79
    %p130 = por %p128, %p129
    %p131 = scmp.ne.s32.totalorder %s120, %s121
    %p132 = scmp.eq.s32.totalorder %s14, 0
    %p133 = por %p131, %p132
    %p134 = scmp.ne.s32.totalorder %s120, %s121
    %p135 = scmp.eq.s32.totalorder %s15, 79
    %p136 = por %p134, %p135
    %p138 = scmp.ne.s32.totalorder %s121, %s137
    %p139 = scmp.eq.s32.totalorder %s15, 0
    %p140 = por %p138, %p139
    %p141 = scmp.le.s32.totalorder 1, %s9
    %p142 = scmp.lt.s32.totalorder %s9, 81
    %p143 = pnand %p141, %p142
    %p144 = pneg %p143
    // Predicated region
    $region9: #{_lambda_.2} parent=5 // pred_check
      _
    $region10: #{_lambda_.2} parent=5 // pred_check_branch
      %146 = sbr.rel (%p143) target = $region12
    $region11: #{_lambda_.2} parent=5 // pred_region
      %s147 = ssub.s32 %s9, 1
      // Predicated region
      $region13: #{_lambda_.2} parent=11 // pred_check
        %p148 = pneg %p105
      $region14: #{_lambda_.2} parent=11 // pred_check_branch
        %150 = sbr.rel (%p148) target = $region16
      $region15: #{_lambda_.2} parent=11 // pred_region
        _
      $region16: #{_lambda_.2} parent=11 // pred_fallthru
        _
    $region12: #{_lambda_.2} parent=5 // pred_fallthru
      _
    %p151 = scmp.lt.s32.totalorder %s9, 80
    // Predicated region
    $region17: #{_lambda_.2} parent=5 // pred_check
      %p152 = pneg %p151
    $region18: #{_lambda_.2} parent=5 // pred_check_branch
      %154 = sbr.rel (%p152) target = $region20
    $region19: #{_lambda_.2} parent=5 // pred_region
      // Predicated region
      $region21: #{_lambda_.2} parent=19 // pred_check
        %p155 = pneg %p52
      $region22: #{_lambda_.2} parent=19 // pred_check_branch
        %157 = sbr.rel (%p155) target = $region24
      $region23: #{_lambda_.2} parent=19 // pred_region
        %s158 = sadd.s32 %s17, %s18
        %p159 = scmp.lt.s32.totalorder %s16, 1
        %s160 = scalar_select %p159, %s16, 1
        %p161 = scmp.lt.s32.totalorder %s158, 11
        %s162 = scalar_select %p161, %s158, 11
        %s163 = smul.addr %s162, 4
        %s164 = smul.addr %s160, 48
        %s165 = sadd.s32 %s163, %s164
        %s166 = smul.addr %s165, 4
        %s167 = scalar_lea.vmem %s0, %s166
        %s168 = sadd.s32 %s17, %s18
      $region24: #{_lambda_.2} parent=19 // pred_fallthru
        _
      // Predicated region
      $region25: #{_lambda_.2} parent=19 // pred_check
        %p169 = pneg %p78
      $region26: #{_lambda_.2} parent=19 // pred_check_branch
        %171 = sbr.rel (%p169) target = $region28
      $region27: #{_lambda_.2} parent=19 // pred_region
        %p172 = scmp.lt.s32.totalorder %s18, 4
        %s173 = scalar_select %p172, %s18, 4
        %s174 = smul.addr %s173, 32
        %s175 = smul.addr %s174, 4
        %s176 = scalar_lea.vmem %s1, %s175
      $region28: #{_lambda_.2} parent=19 // pred_fallthru
        _
    $region20: #{_lambda_.2} parent=5 // pred_fallthru
      _
    %p177 = scmp.le.s32.totalorder 1, %s9
    %p178 = scmp.lt.s32.totalorder %s9, 81
    %p179 = pnand %p177, %p178
    %p180 = pneg %p179
    // Predicated region
    $region29: #{_lambda_.2} parent=5 // pred_check
      _
    $region30: #{_lambda_.2} parent=5 // pred_check_branch
      %182 = sbr.rel (%p179) target = $region32
    $region31: #{_lambda_.2} parent=5 // pred_region
      %s183 = ssub.s32 %s9, 1
      %s184 = sadd.s32 %s20, %s21
      %p185 = scmp.lt.s32.totalorder %s19, 1
      %s186 = scalar_select %p185, %s19, 1
      %p187 = scmp.lt.s32.totalorder %s184, 11
      %s188 = scalar_select %p187, %s184, 11
      %s189 = smul.addr %s188, 4
      %s190 = smul.addr %s186, 48
      %s191 = sadd.s32 %s189, %s190
      %s192 = smul.addr %s191, 4
      %s193 = scalar_lea.vmem %s0, %s192
      %p194 = pneg %p58
      %p195 = pneg %p55
      %p196 = scmp.lt.s32.totalorder %s21, 4
      %s197 = scalar_select %p196, %s21, 4
      %s198 = smul.addr %s197, 32
      %s199 = smul.addr %s198, 4
      %s200 = scalar_lea.vmem %s1, %s199
      %p201 = pneg %p84
      %p202 = pneg %p81
      %p203 = pneg %p105
      %p204 = pneg %p102
      %p205 = pneg %p133
      %p206 = pneg %p130
      %p207 = scmp.lt.s32.totalorder %s19, 1
      %s208 = scalar_select %p207, %s19, 1
      %p209 = scmp.lt.s32.totalorder %s20, 7
      %s210 = scalar_select %p209, %s20, 7
      %s211 = smul.addr %s210, 2
      %s212 = smul.addr %s208, 16
      %s213 = sadd.s32 %s211, %s212
      %s214 = smul.addr %s213, 4
      %s215 = scalar_lea.vmem %s3, %s214
      %s216 = sadd.s32 %s20, %s21
      %p217 = scmp.lt.s32.totalorder %s19, 1
      %s218 = scalar_select %p217, %s19, 1
      %p219 = scmp.lt.s32.totalorder %s216, 11
      %s220 = scalar_select %p219, %s216, 11
      %s221 = smul.addr %s220, 4
      %s222 = smul.addr %s218, 48
      %s223 = sadd.s32 %s221, %s222
      %s224 = smul.addr %s223, 4
      %s225 = scalar_lea.vmem %s0, %s224
      %s226 = sadd.s32 %s20, %s21
      %p227 = scmp.lt.s32.totalorder %s21, 4
      %s228 = scalar_select %p227, %s21, 4
      %s229 = smul.addr %s228, 32
      %s230 = smul.addr %s229, 4
      %s231 = scalar_lea.vmem %s1, %s230
      %p232 = scmp.lt.s32.totalorder %s19, 1
      %s233 = scalar_select %p232, %s19, 1
      %p234 = scmp.lt.s32.totalorder %s20, 7
      %s235 = scalar_select %p234, %s20, 7
      %s236 = smul.addr %s235, 2
      %s237 = smul.addr %s233, 16
      %s238 = sadd.s32 %s236, %s237
      %s239 = smul.addr %s238, 4
      %s240 = scalar_lea.vmem %s3, %s239
      %p242 = scmp.eq.s32.totalorder %s21, 0
      // Predicated region
      $region33: #{_lambda_.2} parent=31 // pred_check
        %p243 = pneg %p242
      $region34: #{_lambda_.2} parent=31 // pred_check_branch
        %245 = sbr.rel (%p243) target = $region36
      $region35: #{_lambda_.2} parent=31 // pred_region
        %246 = vst [vmem:[#allocation2] sm:$0xff] 0.0
        %247 = vst [vmem:[#allocation2 + $0x8] sm:$0xff] 0.0
      $region36: #{_lambda_.2} parent=31 // pred_fallthru
        _
      %v248 = vld [vmem:[%s225] sm:$0xff]
      %v249 = vld [vmem:[%s225 + $0x8] sm:$0x33]
      %v250 = vld [vmem:[%s231] sm:$0xf]
      %v251 = vld [vmem:[%s231 + $0x4] sm:$0xf]
      %v252 = vld [vmem:[%s231 + $0x8] sm:$0xf]
      %v253 = vld [vmem:[%s231 + $0xc] sm:$0xf]
      %v254 = vld [vmem:[%s231 + $0x10] sm:$0xf]
      %v255 = vld [vmem:[%s231 + $0x14] sm:$0xf]
      %v256 = vld [vmem:[%s231 + $0x18] sm:$0xf]
      %v257 = vld [vmem:[%s231 + $0x1c] sm:$0xf]
      %v258 = vld [vmem:[%s231 + $0x20] sm:$0xf]
      %v259 = vld [vmem:[%s231 + $0x24] sm:$0xf]
      %v260 = vld [vmem:[%s231 + $0x28] sm:$0xf]
      %v261 = vld [vmem:[%s231 + $0x2c] sm:$0xf]
      %v262 = vld [vmem:[%s231 + $0x30] sm:$0xf]
      %v263 = vld [vmem:[%s231 + $0x34] sm:$0xf]
      %v264 = vld [vmem:[%s231 + $0x38] sm:$0xf]
      %v265 = vld [vmem:[%s231 + $0x3c] sm:$0xf]
      %v266 = vld [vmem:[%s231 + $0x40] sm:$0xf]
      %v267 = vld [vmem:[%s231 + $0x44] sm:$0xf]
      %v268 = vld [vmem:[%s231 + $0x48] sm:$0xf]
      %v269 = vld [vmem:[%s231 + $0x4c] sm:$0xf]
      %v270 = vld [vmem:[%s231 + $0x50] sm:$0xf]
      %v271 = vld [vmem:[%s231 + $0x54] sm:$0xf]
      %v272 = vld [vmem:[%s231 + $0x58] sm:$0xf]
      %v273 = vld [vmem:[%s231 + $0x5c] sm:$0xf]
      %v274 = vld [vmem:[%s231 + $0x60] sm:$0xf]
      %v275 = vld [vmem:[%s231 + $0x64] sm:$0xf]
      %v276 = vld [vmem:[%s231 + $0x68] sm:$0xf]
      %v277 = vld [vmem:[%s231 + $0x6c] sm:$0xf]
      %v278 = vld [vmem:[%s231 + $0x70] sm:$0xf]
      %v279 = vld [vmem:[%s231 + $0x74] sm:$0xf]
      %v280 = vld [vmem:[%s231 + $0x78] sm:$0xf]
      %v281 = vld [vmem:[%s231 + $0x7c] sm:$0xf]
      %v284 = vunpack.c.l.b16 %v252
      %v285 = vunpack.c.l.b16 %v253
      %v286 = vpack.c.b16 %v285, %v284
      %v289 = vunpack.c.l.b16 %v248
      %v290 = vunpack.c.h.b16 %v248
      %v291 = vunpack.c.l.b16 %v249
      %v292 = vunpack.c.h.b16 %v249
      %v293 = vpack.c.b16 %v291, %v289
      %v294 = vpack.c.b16 %v292, %v290
      %295 = vrot.lane.b32.xlu0 %v293, 127
      %v296 = vpop.permute.xlu0 %295
      %297 = vrot.lane.b32.xlu0 %v294, 127
      %v298 = vpop.permute.xlu0 %297
      %vm299 = vcmask 1039360
      %v300 = vsel %vm299, %v296, %v298
      %vm301 = vcmask 97280
      %v303 = vsel %vm301, %v286, 0
      %vm305 = vcmask 1045504
      %v307 = vsel %vm305, %v300, 0
      %309 = vmatpush.bf16.msra.mxu0 0
      %310 = vmatpush.bf16.msra.mxu0 0
      %311 = vmatpush.bf16.msra.mxu0 0
      %312 = vmatpush.bf16.msra.mxu0 0
      %313 = vmatpush.bf16.msra.mxu0 0
      %314 = vmatpush.bf16.msra.mxu0 0
      %315 = vmatpush.bf16.msra.mxu0 0
      %316 = vmatpush.bf16.msra.mxu0 %v307
      %317 = vmatmul.bf16.gmra.mxu0 %v303
      %v318 = vpop.f32.mrf.mxu0
      %v319 = vadd.f32 0.0, %v318
      %v320 = vpop.f32.mrf.mxu0
      %v321 = vadd.f32 0.0, %v320
      %322 = vdwg.mxu0
      %v325 = vunpack.c.l.b16 %v250
      %v326 = vunpack.c.l.b16 %v251
      %v327 = vpack.c.b16 %v326, %v325
      %v329 = vsel %vm301, %v327, 0
      %v332 = vsel %vm305, %v293, 0
      %334 = vmatpush.bf16.msra.mxu0 0
      %335 = vmatpush.bf16.msra.mxu0 0
      %336 = vmatpush.bf16.msra.mxu0 0
      %337 = vmatpush.bf16.msra.mxu0 0
      %338 = vmatpush.bf16.msra.mxu0 0
      %339 = vmatpush.bf16.msra.mxu0 0
      %340 = vmatpush.bf16.msra.mxu0 0
      %341 = vmatpush.bf16.msra.mxu0 %v332
      %342 = vmatmul.bf16.gmra.mxu0 %v329
      %v343 = vpop.f32.mrf.mxu0
      %v344 = vadd.f32 %v319, %v343
      %v345 = vpop.f32.mrf.mxu0
      %v346 = vadd.f32 %v321, %v345
      %347 = vdwg.mxu0
      %v350 = vunpack.c.l.b16 %v254
      %v351 = vunpack.c.l.b16 %v255
      %v352 = vpack.c.b16 %v351, %v350
      %353 = vrot.lane.b32.xlu0 %v293, 126
      %v354 = vpop.permute.xlu0 %353
      %355 = vrot.lane.b32.xlu0 %v294, 126
      %v356 = vpop.permute.xlu0 %355
      %vm357 = vcmask 1031168
      %v358 = vsel %vm357, %v354, %v356
      %v360 = vsel %vm301, %v352, 0
      %v363 = vsel %vm305, %v358, 0
      %365 = vmatpush.bf16.msra.mxu0 0
      %366 = vmatpush.bf16.msra.mxu0 0
      %367 = vmatpush.bf16.msra.mxu0 0
      %368 = vmatpush.bf16.msra.mxu0 0
      %369 = vmatpush.bf16.msra.mxu0 0
      %370 = vmatpush.bf16.msra.mxu0 0
      %371 = vmatpush.bf16.msra.mxu0 0
      %372 = vmatpush.bf16.msra.mxu0 %v363
      %373 = vmatmul.bf16.gmra.mxu0 %v360
      %v374 = vpop.f32.mrf.mxu0
      %v375 = vadd.f32 0.0, %v374
      %v376 = vpop.f32.mrf.mxu0
      %v377 = vadd.f32 0.0, %v376
      %378 = vdwg.mxu0
      %v379 = vadd.f32 %v344, %v375
      %v380 = vadd.f32 %v346, %v377
      %v383 = vunpack.c.l.b16 %v256
      %v384 = vunpack.c.l.b16 %v257
      %v385 = vpack.c.b16 %v384, %v383
      %386 = vrot.lane.b32.xlu0 %v293, 125
      %v387 = vpop.permute.xlu0 %386
      %388 = vrot.lane.b32.xlu0 %v294, 125
      %v389 = vpop.permute.xlu0 %388
      %vm390 = vcmask 1022976
      %v391 = vsel %vm390, %v387, %v389
      %v393 = vsel %vm301, %v385, 0
      %v396 = vsel %vm305, %v391, 0
      %398 = vmatpush.bf16.msra.mxu0 0
      %399 = vmatpush.bf16.msra.mxu0 0
      %400 = vmatpush.bf16.msra.mxu0 0
      %401 = vmatpush.bf16.msra.mxu0 0
      %402 = vmatpush.bf16.msra.mxu0 0
      %403 = vmatpush.bf16.msra.mxu0 0
      %404 = vmatpush.bf16.msra.mxu0 0
      %405 = vmatpush.bf16.msra.mxu0 %v396
      %406 = vmatmul.bf16.gmra.mxu0 %v393
      %v407 = vpop.f32.mrf.mxu0
      %v408 = vadd.f32 0.0, %v407
      %v409 = vpop.f32.mrf.mxu0
      %v410 = vadd.f32 0.0, %v409
      %411 = vdwg.mxu0
      %v412 = vadd.f32 %v379, %v408
      %v413 = vadd.f32 %v380, %v410
      %v416 = vunpack.c.l.b16 %v258
      %v417 = vunpack.c.l.b16 %v259
      %v418 = vpack.c.b16 %v417, %v416
      %419 = vrot.lane.b32.xlu0 %v293, 117
      %v420 = vpop.permute.xlu0 %419
      %421 = vrot.lane.b32.xlu0 %v294, 117
      %v422 = vpop.permute.xlu0 %421
      %vm423 = vcmask 957440
      %v424 = vsel %vm423, %v420, %v422
      %v426 = vsel %vm301, %v418, 0
      %v429 = vsel %vm305, %v424, 0
      %431 = vmatpush.bf16.msra.mxu0 0
      %432 = vmatpush.bf16.msra.mxu0 0
      %433 = vmatpush.bf16.msra.mxu0 0
      %434 = vmatpush.bf16.msra.mxu0 0
      %435 = vmatpush.bf16.msra.mxu0 0
      %436 = vmatpush.bf16.msra.mxu0 0
      %437 = vmatpush.bf16.msra.mxu0 0
      %438 = vmatpush.bf16.msra.mxu0 %v429
      %439 = vmatmul.bf16.gmra.mxu0 %v426
      %v440 = vpop.f32.mrf.mxu0
      %v441 = vadd.f32 0.0, %v440
      %v442 = vpop.f32.mrf.mxu0
      %v443 = vadd.f32 0.0, %v442
      %444 = vdwg.mxu0
      %v445 = vadd.f32 %v412, %v441
      %v446 = vadd.f32 %v413, %v443
      %v449 = vunpack.c.l.b16 %v260
      %v450 = vunpack.c.l.b16 %v261
      %v451 = vpack.c.b16 %v450, %v449
      %452 = vrot.lane.b32.xlu0 %v293, 116
      %v453 = vpop.permute.xlu0 %452
      %454 = vrot.lane.b32.xlu0 %v294, 116
      %v455 = vpop.permute.xlu0 %454
      %vm456 = vcmask 949248
      %v457 = vsel %vm456, %v453, %v455
      %v459 = vsel %vm301, %v451, 0
      %v462 = vsel %vm305, %v457, 0
      %464 = vmatpush.bf16.msra.mxu0 0
      %465 = vmatpush.bf16.msra.mxu0 0
      %466 = vmatpush.bf16.msra.mxu0 0
      %467 = vmatpush.bf16.msra.mxu0 0
      %468 = vmatpush.bf16.msra.mxu0 0
      %469 = vmatpush.bf16.msra.mxu0 0
      %470 = vmatpush.bf16.msra.mxu0 0
      %471 = vmatpush.bf16.msra.mxu0 %v462
      %472 = vmatmul.bf16.gmra.mxu0 %v459
      %v473 = vpop.f32.mrf.mxu0
      %v474 = vadd.f32 0.0, %v473
      %v475 = vpop.f32.mrf.mxu0
      %v476 = vadd.f32 0.0, %v475
      %477 = vdwg.mxu0
      %v478 = vadd.f32 %v445, %v474
      %v479 = vadd.f32 %v446, %v476
      %v482 = vunpack.c.l.b16 %v262
      %v483 = vunpack.c.l.b16 %v263
      %v484 = vpack.c.b16 %v483, %v482
      %485 = vrot.lane.b32.xlu0 %v293, 115
      %v486 = vpop.permute.xlu0 %485
      %487 = vrot.lane.b32.xlu0 %v294, 115
      %v488 = vpop.permute.xlu0 %487
      %vm489 = vcmask 941056
      %v490 = vsel %vm489, %v486, %v488
      %v492 = vsel %vm301, %v484, 0
      %v495 = vsel %vm305, %v490, 0
      %497 = vmatpush.bf16.msra.mxu0 0
      %498 = vmatpush.bf16.msra.mxu0 0
      %499 = vmatpush.bf16.msra.mxu0 0
      %500 = vmatpush.bf16.msra.mxu0 0
      %501 = vmatpush.bf16.msra.mxu0 0
      %502 = vmatpush.bf16.msra.mxu0 0
      %503 = vmatpush.bf16.msra.mxu0 0
      %504 = vmatpush.bf16.msra.mxu0 %v495
      %505 = vmatmul.bf16.gmra.mxu0 %v492
      %v506 = vpop.f32.mrf.mxu0
      %v507 = vadd.f32 0.0, %v506
      %v508 = vpop.f32.mrf.mxu0
      %v509 = vadd.f32 0.0, %v508
      %510 = vdwg.mxu0
      %v511 = vadd.f32 %v478, %v507
      %v512 = vadd.f32 %v479, %v509
      %v515 = vunpack.c.l.b16 %v264
      %v516 = vunpack.c.l.b16 %v265
      %v517 = vpack.c.b16 %v516, %v515
      %518 = vrot.lane.b32.xlu0 %v293, 114
      %v519 = vpop.permute.xlu0 %518
      %520 = vrot.lane.b32.xlu0 %v294, 114
      %v521 = vpop.permute.xlu0 %520
      %vm522 = vcmask 932864
      %v523 = vsel %vm522, %v519, %v521
      %v525 = vsel %vm301, %v517, 0
      %v528 = vsel %vm305, %v523, 0
      %530 = vmatpush.bf16.msra.mxu0 0
      %531 = vmatpush.bf16.msra.mxu0 0
      %532 = vmatpush.bf16.msra.mxu0 0
      %533 = vmatpush.bf16.msra.mxu0 0
      %534 = vmatpush.bf16.msra.mxu0 0
      %535 = vmatpush.bf16.msra.mxu0 0
      %536 = vmatpush.bf16.msra.mxu0 0
      %537 = vmatpush.bf16.msra.mxu0 %v528
      %538 = vmatmul.bf16.gmra.mxu0 %v525
      %v539 = vpop.f32.mrf.mxu0
      %v540 = vadd.f32 0.0, %v539
      %v541 = vpop.f32.mrf.mxu0
      %v542 = vadd.f32 0.0, %v541
      %543 = vdwg.mxu0
      %v544 = vadd.f32 %v511, %v540
      %v545 = vadd.f32 %v512, %v542
      %v548 = vunpack.c.l.b16 %v266
      %v549 = vunpack.c.l.b16 %v267
      %v550 = vpack.c.b16 %v549, %v548
      %551 = vrot.lane.b32.xlu0 %v293, 106
      %v552 = vpop.permute.xlu0 %551
      %553 = vrot.lane.b32.xlu0 %v294, 106
      %v554 = vpop.permute.xlu0 %553
      %vm555 = vcmask 867328
      %v556 = vsel %vm555, %v552, %v554
      %v558 = vsel %vm301, %v550, 0
      %v561 = vsel %vm305, %v556, 0
      %563 = vmatpush.bf16.msra.mxu0 0
      %564 = vmatpush.bf16.msra.mxu0 0
      %565 = vmatpush.bf16.msra.mxu0 0
      %566 = vmatpush.bf16.msra.mxu0 0
      %567 = vmatpush.bf16.msra.mxu0 0
      %568 = vmatpush.bf16.msra.mxu0 0
      %569 = vmatpush.bf16.msra.mxu0 0
      %570 = vmatpush.bf16.msra.mxu0 %v561
      %571 = vmatmul.bf16.gmra.mxu0 %v558
      %v572 = vpop.f32.mrf.mxu0
      %v573 = vadd.f32 0.0, %v572
      %v574 = vpop.f32.mrf.mxu0
      %v575 = vadd.f32 0.0, %v574
      %576 = vdwg.mxu0
      %v577 = vadd.f32 %v544, %v573
      %v578 = vadd.f32 %v545, %v575
      %v581 = vunpack.c.l.b16 %v268
      %v582 = vunpack.c.l.b16 %v269
      %v583 = vpack.c.b16 %v582, %v581
      %584 = vrot.lane.b32.xlu0 %v293, 105
      %v585 = vpop.permute.xlu0 %584
      %586 = vrot.lane.b32.xlu0 %v294, 105
      %v587 = vpop.permute.xlu0 %586
      %vm588 = vcmask 859136
      %v589 = vsel %vm588, %v585, %v587
      %v591 = vsel %vm301, %v583, 0
      %v594 = vsel %vm305, %v589, 0
      %596 = vmatpush.bf16.msra.mxu0 0
      %597 = vmatpush.bf16.msra.mxu0 0
      %598 = vmatpush.bf16.msra.mxu0 0
      %599 = vmatpush.bf16.msra.mxu0 0
      %600 = vmatpush.bf16.msra.mxu0 0
      %601 = vmatpush.bf16.msra.mxu0 0
      %602 = vmatpush.bf16.msra.mxu0 0
      %603 = vmatpush.bf16.msra.mxu0 %v594
      %604 = vmatmul.bf16.gmra.mxu0 %v591
      %v605 = vpop.f32.mrf.mxu0
      %v606 = vadd.f32 0.0, %v605
      %v607 = vpop.f32.mrf.mxu0
      %v608 = vadd.f32 0.0, %v607
      %609 = vdwg.mxu0
      %v610 = vadd.f32 %v577, %v606
      %v611 = vadd.f32 %v578, %v608
      %v614 = vunpack.c.l.b16 %v270
      %v615 = vunpack.c.l.b16 %v271
      %v616 = vpack.c.b16 %v615, %v614
      %617 = vrot.lane.b32.xlu0 %v293, 104
      %v618 = vpop.permute.xlu0 %617
      %619 = vrot.lane.b32.xlu0 %v294, 104
      %v620 = vpop.permute.xlu0 %619
      %vm621 = vcmask 850944
      %v622 = vsel %vm621, %v618, %v620
      %v624 = vsel %vm301, %v616, 0
      %v627 = vsel %vm305, %v622, 0
      %629 = vmatpush.bf16.msra.mxu0 0
      %630 = vmatpush.bf16.msra.mxu0 0
      %631 = vmatpush.bf16.msra.mxu0 0
      %632 = vmatpush.bf16.msra.mxu0 0
      %633 = vmatpush.bf16.msra.mxu0 0
      %634 = vmatpush.bf16.msra.mxu0 0
      %635 = vmatpush.bf16.msra.mxu0 0
      %636 = vmatpush.bf16.msra.mxu0 %v627
      %637 = vmatmul.bf16.gmra.mxu0 %v624
      %v638 = vpop.f32.mrf.mxu0
      %v639 = vadd.f32 0.0, %v638
      %v640 = vpop.f32.mrf.mxu0
      %v641 = vadd.f32 0.0, %v640
      %642 = vdwg.mxu0
      %v643 = vadd.f32 %v610, %v639
      %v644 = vadd.f32 %v611, %v641
      %v647 = vunpack.c.l.b16 %v272
      %v648 = vunpack.c.l.b16 %v273
      %v649 = vpack.c.b16 %v648, %v647
      %650 = vrot.lane.b32.xlu0 %v293, 103
      %v651 = vpop.permute.xlu0 %650
      %652 = vrot.lane.b32.xlu0 %v294, 103
      %v653 = vpop.permute.xlu0 %652
      %vm654 = vcmask 842752
      %v655 = vsel %vm654, %v651, %v653
      %v657 = vsel %vm301, %v649, 0
      %v660 = vsel %vm305, %v655, 0
      %662 = vmatpush.bf16.msra.mxu0 0
      %663 = vmatpush.bf16.msra.mxu0 0
      %664 = vmatpush.bf16.msra.mxu0 0
      %665 = vmatpush.bf16.msra.mxu0 0
      %666 = vmatpush.bf16.msra.mxu0 0
      %667 = vmatpush.bf16.msra.mxu0 0
      %668 = vmatpush.bf16.msra.mxu0 0
      %669 = vmatpush.bf16.msra.mxu0 %v660
      %670 = vmatmul.bf16.gmra.mxu0 %v657
      %v671 = vpop.f32.mrf.mxu0
      %v672 = vadd.f32 0.0, %v671
      %v673 = vpop.f32.mrf.mxu0
      %v674 = vadd.f32 0.0, %v673
      %675 = vdwg.mxu0
      %v676 = vadd.f32 %v643, %v672
      %v677 = vadd.f32 %v644, %v674
      %v680 = vunpack.c.l.b16 %v274
      %v681 = vunpack.c.l.b16 %v275
      %v682 = vpack.c.b16 %v681, %v680
      %683 = vrot.lane.b32.xlu0 %v293, 95
      %v684 = vpop.permute.xlu0 %683
      %685 = vrot.lane.b32.xlu0 %v294, 95
      %v686 = vpop.permute.xlu0 %685
      %vm687 = vcmask 777216
      %v688 = vsel %vm687, %v684, %v686
      %v690 = vsel %vm301, %v682, 0
      %v693 = vsel %vm305, %v688, 0
      %695 = vmatpush.bf16.msra.mxu0 0
      %696 = vmatpush.bf16.msra.mxu0 0
      %697 = vmatpush.bf16.msra.mxu0 0
      %698 = vmatpush.bf16.msra.mxu0 0
      %699 = vmatpush.bf16.msra.mxu0 0
      %700 = vmatpush.bf16.msra.mxu0 0
      %701 = vmatpush.bf16.msra.mxu0 0
      %702 = vmatpush.bf16.msra.mxu0 %v693
      %703 = vmatmul.bf16.gmra.mxu0 %v690
      %v704 = vpop.f32.mrf.mxu0
      %v705 = vadd.f32 0.0, %v704
      %v706 = vpop.f32.mrf.mxu0
      %v707 = vadd.f32 0.0, %v706
      %708 = vdwg.mxu0
      %v709 = vadd.f32 %v676, %v705
      %v710 = vadd.f32 %v677, %v707
      %v713 = vunpack.c.l.b16 %v276
      %v714 = vunpack.c.l.b16 %v277
      %v715 = vpack.c.b16 %v714, %v713
      %716 = vrot.lane.b32.xlu0 %v293, 94
      %v717 = vpop.permute.xlu0 %716
      %718 = vrot.lane.b32.xlu0 %v294, 94
      %v719 = vpop.permute.xlu0 %718
      %vm720 = vcmask 769024
      %v721 = vsel %vm720, %v717, %v719
      %v723 = vsel %vm301, %v715, 0
      %v726 = vsel %vm305, %v721, 0
      %728 = vmatpush.bf16.msra.mxu0 0
      %729 = vmatpush.bf16.msra.mxu0 0
      %730 = vmatpush.bf16.msra.mxu0 0
      %731 = vmatpush.bf16.msra.mxu0 0
      %732 = vmatpush.bf16.msra.mxu0 0
      %733 = vmatpush.bf16.msra.mxu0 0
      %734 = vmatpush.bf16.msra.mxu0 0
      %735 = vmatpush.bf16.msra.mxu0 %v726
      %736 = vmatmul.bf16.gmra.mxu0 %v723
      %v737 = vpop.f32.mrf.mxu0
      %v738 = vadd.f32 0.0, %v737
      %v739 = vpop.f32.mrf.mxu0
      %v740 = vadd.f32 0.0, %v739
      %741 = vdwg.mxu0
      %v742 = vadd.f32 %v709, %v738
      %v743 = vadd.f32 %v710, %v740
      %v746 = vunpack.c.l.b16 %v278
      %v747 = vunpack.c.l.b16 %v279
      %v748 = vpack.c.b16 %v747, %v746
      %749 = vrot.lane.b32.xlu0 %v293, 93
      %v750 = vpop.permute.xlu0 %749
      %751 = vrot.lane.b32.xlu0 %v294, 93
      %v752 = vpop.permute.xlu0 %751
      %vm753 = vcmask 760832
      %v754 = vsel %vm753, %v750, %v752
      %v756 = vsel %vm301, %v748, 0
      %v759 = vsel %vm305, %v754, 0
      %761 = vmatpush.bf16.msra.mxu0 0
      %762 = vmatpush.bf16.msra.mxu0 0
      %763 = vmatpush.bf16.msra.mxu0 0
      %764 = vmatpush.bf16.msra.mxu0 0
      %765 = vmatpush.bf16.msra.mxu0 0
      %766 = vmatpush.bf16.msra.mxu0 0
      %767 = vmatpush.bf16.msra.mxu0 0
      %768 = vmatpush.bf16.msra.mxu0 %v759
      %769 = vmatmul.bf16.gmra.mxu0 %v756
      %v770 = vpop.f32.mrf.mxu0
      %v771 = vadd.f32 0.0, %v770
      %v772 = vpop.f32.mrf.mxu0
      %v773 = vadd.f32 0.0, %v772
      %774 = vdwg.mxu0
      %v775 = vadd.f32 %v742, %v771
      %v776 = vadd.f32 %v743, %v773
      %v779 = vunpack.c.l.b16 %v280
      %v780 = vunpack.c.l.b16 %v281
      %v781 = vpack.c.b16 %v780, %v779
      %782 = vrot.lane.b32.xlu0 %v293, 92
      %v783 = vpop.permute.xlu0 %782
      %784 = vrot.lane.b32.xlu0 %v294, 92
      %v785 = vpop.permute.xlu0 %784
      %vm786 = vcmask 752640
      %v787 = vsel %vm786, %v783, %v785
      %v789 = vsel %vm301, %v781, 0
      %v792 = vsel %vm305, %v787, 0
      %794 = vmatpush.bf16.msra.mxu0 0
      %795 = vmatpush.bf16.msra.mxu0 0
      %796 = vmatpush.bf16.msra.mxu0 0
      %797 = vmatpush.bf16.msra.mxu0 0
      %798 = vmatpush.bf16.msra.mxu0 0
      %799 = vmatpush.bf16.msra.mxu0 0
      %800 = vmatpush.bf16.msra.mxu0 0
      %801 = vmatpush.bf16.msra.mxu0 %v792
      %802 = vmatmul.bf16.gmra.mxu0 %v789
      %v803 = vpop.f32.mrf.mxu0
      %v804 = vadd.f32 0.0, %v803
      %v805 = vpop.f32.mrf.mxu0
      %v806 = vadd.f32 0.0, %v805
      %807 = vdwg.mxu0
      %v808 = vadd.f32 %v775, %v804
      %v809 = vadd.f32 %v776, %v806
      %v810 = vld [vmem:[#allocation2] sm:$0xff]
      %v811 = vld [vmem:[#allocation2 + $0x8] sm:$0xff]
      %v812 = vadd.f32 %v810, %v808
      %v813 = vadd.f32 %v811, %v809
      %814 = vst [vmem:[#allocation2] sm:$0xff] %v812
      %815 = vst [vmem:[#allocation2 + $0x8] sm:$0xff] %v813
      %p816 = scmp.eq.s32.totalorder %s21, 4
      // Predicated region
      $region37: #{_lambda_.2} parent=31 // pred_check
        %p817 = pneg %p816
      $region38: #{_lambda_.2} parent=31 // pred_check_branch
        %819 = sbr.rel (%p817) target = $region40
      $region39: #{_lambda_.2} parent=31 // pred_region
        %v820 = vld [vmem:[#allocation2] sm:$0xff]
        %v821 = vld [vmem:[#allocation2 + $0x8] sm:$0xff]
        %v822 = vld [vmem:[%s2] sm:$0xff]
        %v823 = vld [vmem:[%s2 + $0x8] sm:$0xff]
        %825 = vset.pattern.permute.xlu0 0
        %826 = vperm.xlu0 %825, %v822
        %v827 = vpop.permute.xlu0 %826
        %830 = vset.pattern.permute.xlu0 0
        %831 = vperm.xlu0 %830, %v823
        %v832 = vpop.permute.xlu0 %831
        %v834 = vadd.f32 %v820, %v827
        %v835 = vadd.f32 %v821, %v832
        %v836 = vmax.f32 %v834, 0.0
        %v837 = vmax.f32 %v835, 0.0
        %v838 = vpack.c.bf16 %v836, %v836
        %v839 = vpack.c.bf16 %v837, %v837
        %840 = vst [vmem:[%s240] sm:$0xf] %v838
        %841 = vst [vmem:[%s240 + $0x4] sm:$0xf] %v839
      $region40: #{_lambda_.2} parent=31 // pred_fallthru
        _
      %p842 = scmp.lt.s32.totalorder %s19, 1
      %s843 = scalar_select %p842, %s19, 1
      %p844 = scmp.lt.s32.totalorder %s20, 7
      %s845 = scalar_select %p844, %s20, 7
      %s846 = smul.addr %s845, 2
      %s847 = smul.addr %s843, 16
      %s848 = sadd.s32 %s846, %s847
      %s849 = smul.addr %s848, 4
      %s850 = scalar_lea.vmem %s3, %s849
      // Predicated region
      $region41: #{_lambda_.2} parent=31 // pred_check
        %p851 = pneg %p130
      $region42: #{_lambda_.2} parent=31 // pred_check_branch
        %853 = sbr.rel (%p851) target = $region44
      $region43: #{_lambda_.2} parent=31 // pred_region
        _
      $region44: #{_lambda_.2} parent=31 // pred_fallthru
        _
    $region32: #{_lambda_.2} parent=5 // pred_fallthru
      _
    %p854 = scmp.le.s32.totalorder 2, %s9
    // Predicated region
    $region45: #{_lambda_.2} parent=5 // pred_check
      %p855 = pneg %p854
    $region46: #{_lambda_.2} parent=5 // pred_check_branch
      %857 = sbr.rel (%p855) target = $region48
    $region47: #{_lambda_.2} parent=5 // pred_region
      %s858 = ssub.s32 %s9, 2
      // Predicated region
      $region49: #{_lambda_.2} parent=47 // pred_check
        %p859 = pneg %p136
      $region50: #{_lambda_.2} parent=47 // pred_check_branch
        %861 = sbr.rel (%p859) target = $region52
      $region51: #{_lambda_.2} parent=47 // pred_region
        %p862 = scmp.lt.s32.totalorder %s22, 1
        %s863 = scalar_select %p862, %s22, 1
        %p864 = scmp.lt.s32.totalorder %s23, 7
        %s865 = scalar_select %p864, %s23, 7
        %s866 = smul.addr %s865, 2
        %s867 = smul.addr %s863, 16
        %s868 = sadd.s32 %s866, %s867
        %s869 = smul.addr %s868, 4
        %s870 = scalar_lea.vmem %s3, %s869
      $region52: #{_lambda_.2} parent=47 // pred_fallthru
        _
    $region48: #{_lambda_.2} parent=5 // pred_fallthru
      _
  $region6: #{_lambda_.2} parent=0 // loop_footer
    %s13 = sadd.s32 1, %s9
  $region7: #{_lambda_.2} parent=0 // loop_footer_branch
    %8 = sbr.rel target = $region3
  $region8: #{_lambda_.2} parent=0 // loop_exit
    _

// kernel: _lambda_.3
$region0: #{_lambda_.3}
  #allocation0 [shape = 'u32[]', space=smem, size = 0x4, offset = 0x4, fixed_abs, tag = 'smem constant byte address 0x4 - core index']
  #allocation1 [shape = 'u32[72,128]{1,0:T(1,128)}', space=vmem, size = 0x9000, scoped, tag = 'internal scratch']
  %s0 = inlined_call_operand.vmem [shape: bf16[2,8,4,16,5,5], index: 0, kind: input, shape index: {}]
  %s1 = inlined_call_operand.vmem [shape: f32[2,8,16,4,4], index: 1, kind: output, shape index: {}]
  %s2 = sld [smem:[#allocation0]]
  $region37: #{_lambda_.3} parent=0
    _
  %s4 = ssub.s32 1, %s2
  %s5 = scalar_select 0, %s4, %s2
  loop: start=0, step=1, limit=18
  $region2: #{_lambda_.3} parent=0 // loop_pre_header
    _
  $region3: #{_lambda_.3} parent=0 // loop_header
    %s7 = sphi 0, %s11
    %p8 = scmp.ge.s32.totalorder %s7, 18
    %s14 = sphi 0, %s26
    %s15 = sphi 0, %s22
    %s16 = sphi 0, %s14
    %s17 = sphi 0, %s15
    %s18 = sphi 0, %s16
    %s19 = sphi 0, %s17
    %s31 = sphi 0, %s33
    %s34 = sphi 0, %s31
    %s35 = sphi 0, %s34
    %s51 = sphi 0, %s35
    %s59 = sphi 0, %s61
    %s62 = sphi 0, %s59
    %s63 = sphi 0, %s62
    %s79 = sphi 0, %s63
  $region4: #{_lambda_.3} parent=0 // loop_header_branch
    %10 = sbr.rel (%p8) target = $region8
  $region5: #{_lambda_.3} parent=0 // loop_body
    %s12 = ssub.s32 %s7, 1
    %s13 = ssub.s32 %s7, 2
    %s20 = sadd.s32 1, %s15
    %p21 = scmp.ge.s32.totalorder %s20, 8
    %s22 = scalar_select %p21, 0, %s20
    %s23 = sadd.s32 1, %s14
    %s24 = scalar_select %p21, %s23, %s14
    %p25 = scmp.ge.s32.totalorder %s24, 2
    %s26 = scalar_select %p25, 0, %s24
    %s27 = ssub.s32 %s14, %s26
    %s28 = ssub.s32 %s15, %s22
    %s29 = sor.u32 %s27, %s28
    %p30 = scmp.eq.s32.totalorder %s29, 0
    %s32 = sadd.s32 %s31, 1
    %s33 = scalar_select %p30, %s31, %s32
    %p36 = pneg %p30
    %p37 = scmp.eq.s32.totalorder %s7, 15
    %p38 = por %p36, %p37
    %p39 = scmp.ne.s32.totalorder %s31, %s34
    %p40 = scmp.eq.s32.totalorder %s7, 0
    %p41 = por %p39, %p40
    %p42 = scmp.ne.s32.totalorder %s31, %s34
    %p43 = scmp.eq.s32.totalorder %s12, 15
    %p44 = por %p42, %p43
    %p45 = scmp.ne.s32.totalorder %s34, %s35
    %p46 = scmp.eq.s32.totalorder %s12, 0
    %p47 = por %p45, %p46
    %p48 = scmp.ne.s32.totalorder %s34, %s35
    %p49 = scmp.eq.s32.totalorder %s13, 15
    %p50 = por %p48, %p49
    %p52 = scmp.ne.s32.totalorder %s35, %s51
    %p53 = scmp.eq.s32.totalorder %s13, 0
    %p54 = por %p52, %p53
    %s55 = ssub.s32 %s14, %s26
    %s56 = ssub.s32 %s15, %s22
    %s57 = sor.u32 %s55, %s56
    %p58 = scmp.eq.s32.totalorder %s57, 0
    %s60 = sadd.s32 %s59, 1
    %s61 = scalar_select %p58, %s59, %s60
    %p64 = pneg %p58
    %p65 = scmp.eq.s32.totalorder %s7, 15
    %p66 = por %p64, %p65
    %p67 = scmp.ne.s32.totalorder %s59, %s62
    %p68 = scmp.eq.s32.totalorder %s7, 0
    %p69 = por %p67, %p68
    %p70 = scmp.ne.s32.totalorder %s59, %s62
    %p71 = scmp.eq.s32.totalorder %s12, 15
    %p72 = por %p70, %p71
    %p73 = scmp.ne.s32.totalorder %s62, %s63
    %p74 = scmp.eq.s32.totalorder %s12, 0
    %p75 = por %p73, %p74
    %p76 = scmp.ne.s32.totalorder %s62, %s63
    %p77 = scmp.eq.s32.totalorder %s13, 15
    %p78 = por %p76, %p77
    %p80 = scmp.ne.s32.totalorder %s63, %s79
    %p81 = scmp.eq.s32.totalorder %s13, 0
    %p82 = por %p80, %p81
    %p83 = scmp.le.s32.totalorder 1, %s7
    %p84 = scmp.lt.s32.totalorder %s7, 17
    %p85 = pnand %p83, %p84
    %p86 = pneg %p85
    // Predicated region
    $region9: #{_lambda_.3} parent=5 // pred_check
      _
    $region10: #{_lambda_.3} parent=5 // pred_check_branch
      %88 = sbr.rel (%p85) target = $region12
    $region11: #{_lambda_.3} parent=5 // pred_region
      %s89 = ssub.s32 %s7, 1
    $region12: #{_lambda_.3} parent=5 // pred_fallthru
      _
    %p90 = scmp.lt.s32.totalorder %s7, 16
    // Predicated region
    $region13: #{_lambda_.3} parent=5 // pred_check
      %p91 = pneg %p90
    $region14: #{_lambda_.3} parent=5 // pred_check_branch
      %93 = sbr.rel (%p91) target = $region16
    $region15: #{_lambda_.3} parent=5 // pred_region
      // Predicated region
      $region17: #{_lambda_.3} parent=15 // pred_check
        %p94 = pneg %p41
      $region18: #{_lambda_.3} parent=15 // pred_check_branch
        %96 = sbr.rel (%p94) target = $region20
      $region19: #{_lambda_.3} parent=15 // pred_region
        %p97 = scmp.lt.s32.totalorder %s14, 1
        %s98 = scalar_select %p97, %s14, 1
        %p99 = scmp.lt.s32.totalorder %s15, 7
        %s100 = scalar_select %p99, %s15, 7
        %s101 = smul.addr %s100, 64
        %s102 = smul.addr %s98, 512
        %s103 = sadd.s32 %s101, %s102
        %s104 = smul.addr %s103, 4
        %s105 = scalar_lea.vmem %s0, %s104
      $region20: #{_lambda_.3} parent=15 // pred_fallthru
        _
    $region16: #{_lambda_.3} parent=5 // pred_fallthru
      _
    %p106 = scmp.le.s32.totalorder 1, %s7
    %p107 = scmp.lt.s32.totalorder %s7, 17
    %p108 = pnand %p106, %p107
    %p109 = pneg %p108
    // Predicated region
    $region21: #{_lambda_.3} parent=5 // pred_check
      _
    $region22: #{_lambda_.3} parent=5 // pred_check_branch
      %111 = sbr.rel (%p108) target = $region24
    $region23: #{_lambda_.3} parent=5 // pred_region
      %s112 = ssub.s32 %s7, 1
      %p113 = scmp.lt.s32.totalorder %s16, 1
      %s114 = scalar_select %p113, %s16, 1
      %p115 = scmp.lt.s32.totalorder %s17, 7
      %s116 = scalar_select %p115, %s17, 7
      %s117 = smul.addr %s116, 64
      %s118 = smul.addr %s114, 512
      %s119 = sadd.s32 %s117, %s118
      %s120 = smul.addr %s119, 4
      %s121 = scalar_lea.vmem %s0, %s120
      %p122 = pneg %p47
      %p123 = pneg %p44
      %p124 = pneg %p75
      %p125 = pneg %p72
      %p126 = scmp.lt.s32.totalorder %s16, 1
      %s127 = scalar_select %p126, %s16, 1
      %p128 = scmp.lt.s32.totalorder %s17, 7
      %s129 = scalar_select %p128, %s17, 7
      %s130 = smul.addr %s129, 16
      %s131 = smul.addr %s127, 128
      %s132 = sadd.s32 %s130, %s131
      %s133 = smul.addr %s132, 4
      %s134 = scalar_lea.vmem %s1, %s133
      %p135 = scmp.lt.s32.totalorder %s16, 1
      %s136 = scalar_select %p135, %s16, 1
      %p137 = scmp.lt.s32.totalorder %s17, 7
      %s138 = scalar_select %p137, %s17, 7
      %s139 = smul.addr %s138, 64
      %s140 = smul.addr %s136, 512
      %s141 = sadd.s32 %s139, %s140
      %s142 = smul.addr %s141, 4
      %s143 = scalar_lea.vmem %s0, %s142
      %p144 = scmp.lt.s32.totalorder %s16, 1
      %s145 = scalar_select %p144, %s16, 1
      %p146 = scmp.lt.s32.totalorder %s17, 7
      %s147 = scalar_select %p146, %s17, 7
      %s148 = smul.addr %s147, 16
      %s149 = smul.addr %s145, 128
      %s150 = sadd.s32 %s148, %s149
      %s151 = smul.addr %s150, 4
      %s152 = scalar_lea.vmem %s1, %s151
      %v153 = vld [vmem:[%s143] sm:$0x7]
      %v154 = vld [vmem:[%s143 + $0x4] sm:$0x7]
      %v155 = vld [vmem:[%s143 + $0x8] sm:$0x7]
      %v156 = vld [vmem:[%s143 + $0xc] sm:$0x7]
      %v157 = vld [vmem:[%s143 + $0x10] sm:$0x7]
      %v158 = vld [vmem:[%s143 + $0x14] sm:$0x7]
      %v159 = vld [vmem:[%s143 + $0x18] sm:$0x7]
      %v160 = vld [vmem:[%s143 + $0x1c] sm:$0x7]
      %v161 = vld [vmem:[%s143 + $0x20] sm:$0x7]
      %v162 = vld [vmem:[%s143 + $0x24] sm:$0x7]
      %v163 = vld [vmem:[%s143 + $0x28] sm:$0x7]
      %v164 = vld [vmem:[%s143 + $0x2c] sm:$0x7]
      %v165 = vld [vmem:[%s143 + $0x30] sm:$0x7]
      %v166 = vld [vmem:[%s143 + $0x34] sm:$0x7]
      %v167 = vld [vmem:[%s143 + $0x38] sm:$0x7]
      %v168 = vld [vmem:[%s143 + $0x3c] sm:$0x7]
      %v169 = vld [vmem:[%s143 + $0x40] sm:$0x7]
      %v170 = vld [vmem:[%s143 + $0x44] sm:$0x7]
      %v171 = vld [vmem:[%s143 + $0x48] sm:$0x7]
      %v172 = vld [vmem:[%s143 + $0x4c] sm:$0x7]
      %v173 = vld [vmem:[%s143 + $0x50] sm:$0x7]
      %v174 = vld [vmem:[%s143 + $0x54] sm:$0x7]
      %v175 = vld [vmem:[%s143 + $0x58] sm:$0x7]
      %v176 = vld [vmem:[%s143 + $0x5c] sm:$0x7]
      %v177 = vld [vmem:[%s143 + $0x60] sm:$0x7]
      %v178 = vld [vmem:[%s143 + $0x64] sm:$0x7]
      %v179 = vld [vmem:[%s143 + $0x68] sm:$0x7]
      %v180 = vld [vmem:[%s143 + $0x6c] sm:$0x7]
      %v181 = vld [vmem:[%s143 + $0x70] sm:$0x7]
      %v182 = vld [vmem:[%s143 + $0x74] sm:$0x7]
      %v183 = vld [vmem:[%s143 + $0x78] sm:$0x7]
      %v184 = vld [vmem:[%s143 + $0x7c] sm:$0x7]
      %v185 = vld [vmem:[%s143 + $0x80] sm:$0x7]
      %v186 = vld [vmem:[%s143 + $0x84] sm:$0x7]
      %v187 = vld [vmem:[%s143 + $0x88] sm:$0x7]
      %v188 = vld [vmem:[%s143 + $0x8c] sm:$0x7]
      %v189 = vld [vmem:[%s143 + $0x90] sm:$0x7]
      %v190 = vld [vmem:[%s143 + $0x94] sm:$0x7]
      %v191 = vld [vmem:[%s143 + $0x98] sm:$0x7]
      %v192 = vld [vmem:[%s143 + $0x9c] sm:$0x7]
      %v193 = vld [vmem:[%s143 + $0xa0] sm:$0x7]
      %v194 = vld [vmem:[%s143 + $0xa4] sm:$0x7]
      %v195 = vld [vmem:[%s143 + $0xa8] sm:$0x7]
      %v196 = vld [vmem:[%s143 + $0xac] sm:$0x7]
      %v197 = vld [vmem:[%s143 + $0xb0] sm:$0x7]
      %v198 = vld [vmem:[%s143 + $0xb4] sm:$0x7]
      %v199 = vld [vmem:[%s143 + $0xb8] sm:$0x7]
      %v200 = vld [vmem:[%s143 + $0xbc] sm:$0x7]
      %v201 = vld [vmem:[%s143 + $0xc0] sm:$0x7]
      %v202 = vld [vmem:[%s143 + $0xc4] sm:$0x7]
      %v203 = vld [vmem:[%s143 + $0xc8] sm:$0x7]
      %v204 = vld [vmem:[%s143 + $0xcc] sm:$0x7]
      %v205 = vld [vmem:[%s143 + $0xd0] sm:$0x7]
      %v206 = vld [vmem:[%s143 + $0xd4] sm:$0x7]
      %v207 = vld [vmem:[%s143 + $0xd8] sm:$0x7]
      %v208 = vld [vmem:[%s143 + $0xdc] sm:$0x7]
      %v209 = vld [vmem:[%s143 + $0xe0] sm:$0x7]
      %v210 = vld [vmem:[%s143 + $0xe4] sm:$0x7]
      %v211 = vld [vmem:[%s143 + $0xe8] sm:$0x7]
      %v212 = vld [vmem:[%s143 + $0xec] sm:$0x7]
      %v213 = vld [vmem:[%s143 + $0xf0] sm:$0x7]
      %v214 = vld [vmem:[%s143 + $0xf4] sm:$0x7]
      %v215 = vld [vmem:[%s143 + $0xf8] sm:$0x7]
      %v216 = vld [vmem:[%s143 + $0xfc] sm:$0x7]
      %v217 = vunpack.c.l.bf16 %v153
      %v218 = vunpack.c.l.bf16 %v154
      %v219 = vunpack.c.l.bf16 %v155
      %v220 = vunpack.c.l.bf16 %v156
      %v221 = vunpack.c.l.bf16 %v157
      %v222 = vunpack.c.l.bf16 %v158
      %v223 = vunpack.c.l.bf16 %v159
      %v224 = vunpack.c.l.bf16 %v160
      %v225 = vunpack.c.l.bf16 %v161
      %v226 = vunpack.c.l.bf16 %v162
      %v227 = vunpack.c.l.bf16 %v163
      %v228 = vunpack.c.l.bf16 %v164
      %v229 = vunpack.c.l.bf16 %v165
      %v230 = vunpack.c.l.bf16 %v166
      %v231 = vunpack.c.l.bf16 %v167
      %v232 = vunpack.c.l.bf16 %v168
      %v233 = vunpack.c.l.bf16 %v169
      %v234 = vunpack.c.l.bf16 %v170
      %v235 = vunpack.c.l.bf16 %v171
      %v236 = vunpack.c.l.bf16 %v172
      %v237 = vunpack.c.l.bf16 %v173
      %v238 = vunpack.c.l.bf16 %v174
      %v239 = vunpack.c.l.bf16 %v175
      %v240 = vunpack.c.l.bf16 %v176
      %v241 = vunpack.c.l.bf16 %v177
      %v242 = vunpack.c.l.bf16 %v178
      %v243 = vunpack.c.l.bf16 %v179
      %v244 = vunpack.c.l.bf16 %v180
      %v245 = vunpack.c.l.bf16 %v181
      %v246 = vunpack.c.l.bf16 %v182
      %v247 = vunpack.c.l.bf16 %v183
      %v248 = vunpack.c.l.bf16 %v184
      %v249 = vunpack.c.l.bf16 %v185
      %v250 = vunpack.c.l.bf16 %v186
      %v251 = vunpack.c.l.bf16 %v187
      %v252 = vunpack.c.l.bf16 %v188
      %v253 = vunpack.c.l.bf16 %v189
      %v254 = vunpack.c.l.bf16 %v190
      %v255 = vunpack.c.l.bf16 %v191
      %v256 = vunpack.c.l.bf16 %v192
      %v257 = vunpack.c.l.bf16 %v193
      %v258 = vunpack.c.l.bf16 %v194
      %v259 = vunpack.c.l.bf16 %v195
      %v260 = vunpack.c.l.bf16 %v196
      %v261 = vunpack.c.l.bf16 %v197
      %v262 = vunpack.c.l.bf16 %v198
      %v263 = vunpack.c.l.bf16 %v199
      %v264 = vunpack.c.l.bf16 %v200
      %v265 = vunpack.c.l.bf16 %v201
      %v266 = vunpack.c.l.bf16 %v202
      %v267 = vunpack.c.l.bf16 %v203
      %v268 = vunpack.c.l.bf16 %v204
      %v269 = vunpack.c.l.bf16 %v205
      %v270 = vunpack.c.l.bf16 %v206
      %v271 = vunpack.c.l.bf16 %v207
      %v272 = vunpack.c.l.bf16 %v208
      %v273 = vunpack.c.l.bf16 %v209
      %v274 = vunpack.c.l.bf16 %v210
      %v275 = vunpack.c.l.bf16 %v211
      %v276 = vunpack.c.l.bf16 %v212
      %v277 = vunpack.c.l.bf16 %v213
      %v278 = vunpack.c.l.bf16 %v214
      %v279 = vunpack.c.l.bf16 %v215
      %v280 = vunpack.c.l.bf16 %v216
      %v281 = vmax.f32 %v217, %v233
      %v282 = vmax.f32 %v218, %v234
      %v283 = vmax.f32 %v219, %v235
      %v284 = vmax.f32 %v220, %v236
      %v285 = vmax.f32 %v221, %v237
      %v286 = vmax.f32 %v222, %v238
      %v287 = vmax.f32 %v223, %v239
      %v288 = vmax.f32 %v224, %v240
      %v289 = vmax.f32 %v225, %v241
      %v290 = vmax.f32 %v226, %v242
      %v291 = vmax.f32 %v227, %v243
      %v292 = vmax.f32 %v228, %v244
      %v293 = vmax.f32 %v229, %v245
      %v294 = vmax.f32 %v230, %v246
      %v295 = vmax.f32 %v231, %v247
      %v296 = vmax.f32 %v232, %v248
      %313 = vrot.lane.b32.xlu0 %v217, 127
      %v314 = vpop.permute.xlu0 %313
      %315 = vrot.lane.b32.xlu0 %v218, 127
      %v316 = vpop.permute.xlu0 %315
      %317 = vrot.lane.b32.xlu0 %v219, 127
      %v318 = vpop.permute.xlu0 %317
      %319 = vrot.lane.b32.xlu0 %v220, 127
      %v320 = vpop.permute.xlu0 %319
      %321 = vrot.lane.b32.xlu0 %v221, 127
      %v322 = vpop.permute.xlu0 %321
      %323 = vrot.lane.b32.xlu0 %v222, 127
      %v324 = vpop.permute.xlu0 %323
      %325 = vrot.lane.b32.xlu0 %v223, 127
      %v326 = vpop.permute.xlu0 %325
      %327 = vrot.lane.b32.xlu0 %v224, 127
      %v328 = vpop.permute.xlu0 %327
      %329 = vrot.lane.b32.xlu0 %v225, 127
      %v330 = vpop.permute.xlu0 %329
      %331 = vrot.lane.b32.xlu0 %v226, 127
      %v332 = vpop.permute.xlu0 %331
      %333 = vrot.lane.b32.xlu0 %v227, 127
      %v334 = vpop.permute.xlu0 %333
      %335 = vrot.lane.b32.xlu0 %v228, 127
      %v336 = vpop.permute.xlu0 %335
      %337 = vrot.lane.b32.xlu0 %v229, 127
      %v338 = vpop.permute.xlu0 %337
      %339 = vrot.lane.b32.xlu0 %v230, 127
      %v340 = vpop.permute.xlu0 %339
      %341 = vrot.lane.b32.xlu0 %v231, 127
      %v342 = vpop.permute.xlu0 %341
      %343 = vrot.lane.b32.xlu0 %v232, 127
      %v344 = vpop.permute.xlu0 %343
      %v361 = vmax.f32 %v281, %v314
      %v362 = vmax.f32 %v282, %v316
      %v363 = vmax.f32 %v283, %v318
      %v364 = vmax.f32 %v284, %v320
      %v365 = vmax.f32 %v285, %v322
      %v366 = vmax.f32 %v286, %v324
      %v367 = vmax.f32 %v287, %v326
      %v368 = vmax.f32 %v288, %v328
      %v369 = vmax.f32 %v289, %v330
      %v370 = vmax.f32 %v290, %v332
      %v371 = vmax.f32 %v291, %v334
      %v372 = vmax.f32 %v292, %v336
      %v373 = vmax.f32 %v293, %v338
      %v374 = vmax.f32 %v294, %v340
      %v375 = vmax.f32 %v295, %v342
      %v376 = vmax.f32 %v296, %v344
      %v377 = vmax.f32 %v361, %v249
      %v378 = vmax.f32 %v362, %v250
      %v379 = vmax.f32 %v363, %v251
      %v380 = vmax.f32 %v364, %v252
      %v381 = vmax.f32 %v365, %v253
      %v382 = vmax.f32 %v366, %v254
      %v383 = vmax.f32 %v367, %v255
      %v384 = vmax.f32 %v368, %v256
      %v385 = vmax.f32 %v369, %v257
      %v386 = vmax.f32 %v370, %v258
      %v387 = vmax.f32 %v371, %v259
      %v388 = vmax.f32 %v372, %v260
      %v389 = vmax.f32 %v373, %v261
      %v390 = vmax.f32 %v374, %v262
      %v391 = vmax.f32 %v375, %v263
      %v392 = vmax.f32 %v376, %v264
      %v393 = vmax.f32 %v377, %v265
      %v394 = vmax.f32 %v378, %v266
      %v395 = vmax.f32 %v379, %v267
      %v396 = vmax.f32 %v380, %v268
      %v397 = vmax.f32 %v381, %v269
      %v398 = vmax.f32 %v382, %v270
      %v399 = vmax.f32 %v383, %v271
      %v400 = vmax.f32 %v384, %v272
      %v401 = vmax.f32 %v385, %v273
      %v402 = vmax.f32 %v386, %v274
      %v403 = vmax.f32 %v387, %v275
      %v404 = vmax.f32 %v388, %v276
      %v405 = vmax.f32 %v389, %v277
      %v406 = vmax.f32 %v390, %v278
      %v407 = vmax.f32 %v391, %v279
      %v408 = vmax.f32 %v392, %v280
      %425 = vrot.lane.b32.xlu0 %v249, 127
      %v426 = vpop.permute.xlu0 %425
      %427 = vrot.lane.b32.xlu0 %v250, 127
      %v428 = vpop.permute.xlu0 %427
      %429 = vrot.lane.b32.xlu0 %v251, 127
      %v430 = vpop.permute.xlu0 %429
      %431 = vrot.lane.b32.xlu0 %v252, 127
      %v432 = vpop.permute.xlu0 %431
      %433 = vrot.lane.b32.xlu0 %v253, 127
      %v434 = vpop.permute.xlu0 %433
      %435 = vrot.lane.b32.xlu0 %v254, 127
      %v436 = vpop.permute.xlu0 %435
      %437 = vrot.lane.b32.xlu0 %v255, 127
      %v438 = vpop.permute.xlu0 %437
      %439 = vrot.lane.b32.xlu0 %v256, 127
      %v440 = vpop.permute.xlu0 %439
      %441 = vrot.lane.b32.xlu0 %v257, 127
      %v442 = vpop.permute.xlu0 %441
      %443 = vrot.lane.b32.xlu0 %v258, 127
      %v444 = vpop.permute.xlu0 %443
      %445 = vrot.lane.b32.xlu0 %v259, 127
      %v446 = vpop.permute.xlu0 %445
      %447 = vrot.lane.b32.xlu0 %v260, 127
      %v448 = vpop.permute.xlu0 %447
      %449 = vrot.lane.b32.xlu0 %v261, 127
      %v450 = vpop.permute.xlu0 %449
      %451 = vrot.lane.b32.xlu0 %v262, 127
      %v452 = vpop.permute.xlu0 %451
      %453 = vrot.lane.b32.xlu0 %v263, 127
      %v454 = vpop.permute.xlu0 %453
      %455 = vrot.lane.b32.xlu0 %v264, 127
      %v456 = vpop.permute.xlu0 %455
      %v473 = vmax.f32 %v393, %v426
      %v474 = vmax.f32 %v394, %v428
      %v475 = vmax.f32 %v395, %v430
      %v476 = vmax.f32 %v396, %v432
      %v477 = vmax.f32 %v397, %v434
      %v478 = vmax.f32 %v398, %v436
      %v479 = vmax.f32 %v399, %v438
      %v480 = vmax.f32 %v400, %v440
      %v481 = vmax.f32 %v401, %v442
      %v482 = vmax.f32 %v402, %v444
      %v483 = vmax.f32 %v403, %v446
      %v484 = vmax.f32 %v404, %v448
      %v485 = vmax.f32 %v405, %v450
      %v486 = vmax.f32 %v406, %v452
      %v487 = vmax.f32 %v407, %v454
      %v488 = vmax.f32 %v408, %v456
      %v489 = vrot.slane %v217, 1
      %v490 = vrot.slane %v218, 1
      %v491 = vrot.slane %v219, 1
      %v492 = vrot.slane %v220, 1
      %v493 = vrot.slane %v221, 1
      %v494 = vrot.slane %v222, 1
      %v495 = vrot.slane %v223, 1
      %v496 = vrot.slane %v224, 1
      %v497 = vrot.slane %v225, 1
      %v498 = vrot.slane %v226, 1
      %v499 = vrot.slane %v227, 1
      %v500 = vrot.slane %v228, 1
      %v501 = vrot.slane %v229, 1
      %v502 = vrot.slane %v230, 1
      %v503 = vrot.slane %v231, 1
      %v504 = vrot.slane %v232, 1
      %v521 = vmax.f32 %v473, %v489
      %v522 = vmax.f32 %v474, %v490
      %v523 = vmax.f32 %v475, %v491
      %v524 = vmax.f32 %v476, %v492
      %v525 = vmax.f32 %v477, %v493
      %v526 = vmax.f32 %v478, %v494
      %v527 = vmax.f32 %v479, %v495
      %v528 = vmax.f32 %v480, %v496
      %v529 = vmax.f32 %v481, %v497
      %v530 = vmax.f32 %v482, %v498
      %v531 = vmax.f32 %v483, %v499
      %v532 = vmax.f32 %v484, %v500
      %v533 = vmax.f32 %v485, %v501
      %v534 = vmax.f32 %v486, %v502
      %v535 = vmax.f32 %v487, %v503
      %v536 = vmax.f32 %v488, %v504
      %v553 = vrot.slane %v233, 1
      %v554 = vrot.slane %v234, 1
      %v555 = vrot.slane %v235, 1
      %v556 = vrot.slane %v236, 1
      %v557 = vrot.slane %v237, 1
      %v558 = vrot.slane %v238, 1
      %v559 = vrot.slane %v239, 1
      %v560 = vrot.slane %v240, 1
      %v561 = vrot.slane %v241, 1
      %v562 = vrot.slane %v242, 1
      %v563 = vrot.slane %v243, 1
      %v564 = vrot.slane %v244, 1
      %v565 = vrot.slane %v245, 1
      %v566 = vrot.slane %v246, 1
      %v567 = vrot.slane %v247, 1
      %v568 = vrot.slane %v248, 1
      %v585 = vmax.f32 %v521, %v553
      %v586 = vmax.f32 %v522, %v554
      %v587 = vmax.f32 %v523, %v555
      %v588 = vmax.f32 %v524, %v556
      %v589 = vmax.f32 %v525, %v557
      %v590 = vmax.f32 %v526, %v558
      %v591 = vmax.f32 %v527, %v559
      %v592 = vmax.f32 %v528, %v560
      %v593 = vmax.f32 %v529, %v561
      %v594 = vmax.f32 %v530, %v562
      %v595 = vmax.f32 %v531, %v563
      %v596 = vmax.f32 %v532, %v564
      %v597 = vmax.f32 %v533, %v565
      %v598 = vmax.f32 %v534, %v566
      %v599 = vmax.f32 %v535, %v567
      %v600 = vmax.f32 %v536, %v568
      %601 = vrot.lane.b32.xlu0 %v489, 127
      %v602 = vpop.permute.xlu0 %601
      %603 = vrot.lane.b32.xlu0 %v490, 127
      %v604 = vpop.permute.xlu0 %603
      %605 = vrot.lane.b32.xlu0 %v491, 127
      %v606 = vpop.permute.xlu0 %605
      %607 = vrot.lane.b32.xlu0 %v492, 127
      %v608 = vpop.permute.xlu0 %607
      %609 = vrot.lane.b32.xlu0 %v493, 127
      %v610 = vpop.permute.xlu0 %609
      %611 = vrot.lane.b32.xlu0 %v494, 127
      %v612 = vpop.permute.xlu0 %611
      %613 = vrot.lane.b32.xlu0 %v495, 127
      %v614 = vpop.permute.xlu0 %613
      %615 = vrot.lane.b32.xlu0 %v496, 127
      %v616 = vpop.permute.xlu0 %615
      %617 = vrot.lane.b32.xlu0 %v497, 127
      %v618 = vpop.permute.xlu0 %617
      %619 = vrot.lane.b32.xlu0 %v498, 127
      %v620 = vpop.permute.xlu0 %619
      %621 = vrot.lane.b32.xlu0 %v499, 127
      %v622 = vpop.permute.xlu0 %621
      %623 = vrot.lane.b32.xlu0 %v500, 127
      %v624 = vpop.permute.xlu0 %623
      %625 = vrot.lane.b32.xlu0 %v501, 127
      %v626 = vpop.permute.xlu0 %625
      %627 = vrot.lane.b32.xlu0 %v502, 127
      %v628 = vpop.permute.xlu0 %627
      %629 = vrot.lane.b32.xlu0 %v503, 127
      %v630 = vpop.permute.xlu0 %629
      %631 = vrot.lane.b32.xlu0 %v504, 127
      %v632 = vpop.permute.xlu0 %631
      %v649 = vmax.f32 %v585, %v602
      %v650 = vmax.f32 %v586, %v604
      %v651 = vmax.f32 %v587, %v606
      %v652 = vmax.f32 %v588, %v608
      %v653 = vmax.f32 %v589, %v610
      %v654 = vmax.f32 %v590, %v612
      %v655 = vmax.f32 %v591, %v614
      %v656 = vmax.f32 %v592, %v616
      %v657 = vmax.f32 %v593, %v618
      %v658 = vmax.f32 %v594, %v620
      %v659 = vmax.f32 %v595, %v622
      %v660 = vmax.f32 %v596, %v624
      %v661 = vmax.f32 %v597, %v626
      %v662 = vmax.f32 %v598, %v628
      %v663 = vmax.f32 %v599, %v630
      %v664 = vmax.f32 %v600, %v632
      %vm665 = vcmask 27648
      %666 = vst.msk [vmem:[%s152] sm:$0xf] %vm665, %v649
      %667 = vst.msk [vmem:[%s152 + $0x4] sm:$0xf] %vm665, %v650
      %668 = vst.msk [vmem:[%s152 + $0x8] sm:$0xf] %vm665, %v651
      %669 = vst.msk [vmem:[%s152 + $0xc] sm:$0xf] %vm665, %v652
      %670 = vst.msk [vmem:[%s152 + $0x10] sm:$0xf] %vm665, %v653
      %671 = vst.msk [vmem:[%s152 + $0x14] sm:$0xf] %vm665, %v654
      %672 = vst.msk [vmem:[%s152 + $0x18] sm:$0xf] %vm665, %v655
      %673 = vst.msk [vmem:[%s152 + $0x1c] sm:$0xf] %vm665, %v656
      %674 = vst.msk [vmem:[%s152 + $0x20] sm:$0xf] %vm665, %v657
      %675 = vst.msk [vmem:[%s152 + $0x24] sm:$0xf] %vm665, %v658
      %676 = vst.msk [vmem:[%s152 + $0x28] sm:$0xf] %vm665, %v659
      %677 = vst.msk [vmem:[%s152 + $0x2c] sm:$0xf] %vm665, %v660
      %678 = vst.msk [vmem:[%s152 + $0x30] sm:$0xf] %vm665, %v661
      %679 = vst.msk [vmem:[%s152 + $0x34] sm:$0xf] %vm665, %v662
      %680 = vst.msk [vmem:[%s152 + $0x38] sm:$0xf] %vm665, %v663
      %681 = vst.msk [vmem:[%s152 + $0x3c] sm:$0xf] %vm665, %v664
      %p682 = scmp.lt.s32.totalorder %s16, 1
      %s683 = scalar_select %p682, %s16, 1
      %p684 = scmp.lt.s32.totalorder %s17, 7
      %s685 = scalar_select %p684, %s17, 7
      %s686 = smul.addr %s685, 16
      %s687 = smul.addr %s683, 128
      %s688 = sadd.s32 %s686, %s687
      %s689 = smul.addr %s688, 4
      %s690 = scalar_lea.vmem %s1, %s689
      // Predicated region
      $region25: #{_lambda_.3} parent=23 // pred_check
        %p691 = pneg %p72
      $region26: #{_lambda_.3} parent=23 // pred_check_branch
        %693 = sbr.rel (%p691) target = $region28
      $region27: #{_lambda_.3} parent=23 // pred_region
        _
      $region28: #{_lambda_.3} parent=23 // pred_fallthru
        _
    $region24: #{_lambda_.3} parent=5 // pred_fallthru
      _
    %p694 = scmp.le.s32.totalorder 2, %s7
    // Predicated region
    $region29: #{_lambda_.3} parent=5 // pred_check
      %p695 = pneg %p694
    $region30: #{_lambda_.3} parent=5 // pred_check_branch
      %697 = sbr.rel (%p695) target = $region32
    $region31: #{_lambda_.3} parent=5 // pred_region
      %s698 = ssub.s32 %s7, 2
      // Predicated region
      $region33: #{_lambda_.3} parent=31 // pred_check
        %p699 = pneg %p78
      $region34: #{_lambda_.3} parent=31 // pred_check_branch
        %701 = sbr.rel (%p699) target = $region36
      $region35: #{_lambda_.3} parent=31 // pred_region
        %p702 = scmp.lt.s32.totalorder %s18, 1
        %s703 = scalar_select %p702, %s18, 1
        %p704 = scmp.lt.s32.totalorder %s19, 7
        %s705 = scalar_select %p704, %s19, 7
        %s706 = smul.addr %s705, 16
        %s707 = smul.addr %s703, 128
        %s708 = sadd.s32 %s706, %s707
        %s709 = smul.addr %s708, 4
        %s710 = scalar_lea.vmem %s1, %s709
      $region36: #{_lambda_.3} parent=31 // pred_fallthru
        _
    $region32: #{_lambda_.3} parent=5 // pred_fallthru
      _
  $region6: #{_lambda_.3} parent=0 // loop_footer
    %s11 = sadd.s32 1, %s7
  $region7: #{_lambda_.3} parent=0 // loop_footer_branch
    %6 = sbr.rel target = $region3
  $region8: #{_lambda_.3} parent=0 // loop_exit
    _

</llo_original>
